<compile_context>
chip_gen: v5e
topology: v5e:2x2
jax: 0.10.0
libtpu: 0.0.40
codegen_flags: <defaults>
</compile_context>

<pallas_src>
import functools

import jax
import jax.numpy as jnp
from jax import lax
from jax.experimental import pallas as pl
from jax.experimental.pallas import tpu as pltpu


# --------------------------- in-kernel helper math ----------------------------

def _layernorm(z, g, b, eps):
    mu = jnp.mean(z, axis=-1, keepdims=True)
    var = jnp.mean((z - mu) ** 2, axis=-1, keepdims=True)
    return (z - mu) * lax.rsqrt(var + eps) * g + b


def _mh_attention(q, k, v, n_heads, scale):
    """q: (Lq, D), k/v: (S, D), all f32 with bias already added -> (Lq, D)."""
    d = q.shape[-1]
    dh = d // n_heads
    outs = []
    for h in range(n_heads):                      # static unroll over heads
        lo, hi = h * dh, (h + 1) * dh
        qh = (q[:, lo:hi] * scale).astype(jnp.bfloat16)   # (Lq, dh)
        kh = k[:, lo:hi].astype(jnp.bfloat16)             # (S,  dh)
        vh = v[:, lo:hi].astype(jnp.bfloat16)             # (S,  dh)
        s = jnp.dot(qh, kh.T, preferred_element_type=jnp.float32)
        s = s - jnp.max(s, axis=-1, keepdims=True)
        p = jnp.exp(s)
        inv = pl.reciprocal(jnp.sum(p, axis=-1, keepdims=True), approx=True)
        p = p * inv
        outs.append(jnp.dot(p.astype(jnp.bfloat16), vh,
                            preferred_element_type=jnp.float32))
    return jnp.concatenate(outs, axis=-1)          # (Lq, D), lane-dense


# -------------------------- fully fused layer kernel --------------------------

def _decoder_layer_kernel(x_ref, cross_ref,
                          wqkv1_ref, bqkv1_ref, wo1_ref, bo1_ref, g1_ref, be1_ref,
                          wq2_ref, wkv2_ref, bqkv2_ref, wo2_ref, bo2_ref, g2_ref, be2_ref,
                          w1_ref, fb1_ref, w2_ref, fb2_ref, g3_ref, be3_ref,
                          o_ref, *, n_heads, scale, eps):
    x = x_ref[0]            # (L, D) f32 -- residual input
    cr = cross_ref[0]       # (S, D) f32
    d = x.shape[-1]

    # ---------------- self-attention + residual + LayerNorm1 ----------------
    qkv = jnp.dot(x.astype(jnp.bfloat16), wqkv1_ref[...],
                  preferred_element_type=jnp.float32) + bqkv1_ref[...]
    attn1 = _mh_attention(qkv[:, :d], qkv[:, d:2 * d], qkv[:, 2 * d:],
                          n_heads, scale)
    proj1 = jnp.dot(attn1.astype(jnp.bfloat16), wo1_ref[...],
                    preferred_element_type=jnp.float32) + bo1_ref[...]
    x1 = _layernorm(x + proj1, g1_ref[...], be1_ref[...], eps)

    # ---------------- cross-attention + residual + LayerNorm2 ---------------
    bqkv2 = bqkv2_ref[...]
    q2 = jnp.dot(x1.astype(jnp.bfloat16), wq2_ref[...],
                 preferred_element_type=jnp.float32) + bqkv2[:, :d]
    kv2 = jnp.dot(cr.astype(jnp.bfloat16), wkv2_ref[...],
                  preferred_element_type=jnp.float32) + bqkv2[:, d:]
    attn2 = _mh_attention(q2, kv2[:, :d], kv2[:, d:], n_heads, scale)
    proj2 = jnp.dot(attn2.astype(jnp.bfloat16), wo2_ref[...],
                    preferred_element_type=jnp.float32) + bo2_ref[...]
    x2 = _layernorm(x1 + proj2, g2_ref[...], be2_ref[...], eps)

    # --------------- FFN (k=1 convs) + residual + LayerNorm3 ----------------
    h = jnp.dot(x2.astype(jnp.bfloat16), w1_ref[...],
                preferred_element_type=jnp.float32) + fb1_ref[...]
    h = jnp.maximum(h, 0.0)                                   # ReLU in f32
    y = jnp.dot(h.astype(jnp.bfloat16), w2_ref[...],
                preferred_element_type=jnp.float32) + fb2_ref[...]
    o_ref[0] = _layernorm(x2 + y, g3_ref[...], be3_ref[...], eps)


# ------------------------------ Python wrapper --------------------------------

def decoder_layer_forward(x, cross, params, n_heads, eps=1e-5):
    """x: (B, L, D), cross: (B, S, D) -> (B, L, D).  Dropout = identity."""
    b, l, d = x.shape
    s = cross.shape[1]
    assert d % n_heads == 0
    dh = d // n_heads
    scale = 1.0 / (dh ** 0.5)

    sa, ca = params["self_attn"], params["cross_attn"]
    dff = params["W1"].shape[1]

    # Weights cast to bf16 once here (halves HBM traffic); fused Q|K|V (self)
    # and K|V (cross) projections.
    wqkv1 = jnp.concatenate([sa["Wq"], sa["Wk"], sa["Wv"]],
                            axis=1).astype(jnp.bfloat16)          # (D, 3D)
    bqkv1 = jnp.concatenate([sa["bq"], sa["bk"], sa["bv"]]).reshape(1, 3 * d)
    wo1 = sa["Wo"].astype(jnp.bfloat16)
    bo1 = sa["bo"].reshape(1, d)

    wq2 = ca["Wq"].astype(jnp.bfloat16)                           # (D, D)
    wkv2 = jnp.concatenate([ca["Wk"], ca["Wv"]],
                           axis=1).astype(jnp.bfloat16)           # (D, 2D)
    bqkv2 = jnp.concatenate([ca["bq"], ca["bk"], ca["bv"]]).reshape(1, 3 * d)
    wo2 = ca["Wo"].astype(jnp.bfloat16)
    bo2 = ca["bo"].reshape(1, d)

    w1 = params["W1"].astype(jnp.bfloat16)                        # (D, dff)
    fb1 = params["b1"].reshape(1, dff)
    w2 = params["W2"].astype(jnp.bfloat16)                        # (dff, D)
    fb2 = params["b2"].reshape(1, d)

    const = lambda i: (0, 0)   # weight blocks: same block every grid step

    kern = functools.partial(_decoder_layer_kernel,
                             n_heads=n_heads, scale=scale, eps=eps)
    return pl.pallas_call(
        kern,
        grid=(b,),
        in_specs=[
            pl.BlockSpec((1, l, d), lambda i: (i, 0, 0)),   # x
            pl.BlockSpec((1, s, d), lambda i: (i, 0, 0)),   # cross
            pl.BlockSpec((d, 3 * d), const),                # Wqkv (self)
            pl.BlockSpec((1, 3 * d), const),                # b_qkv (self)
            pl.BlockSpec((d, d), const),                    # Wo (self)
            pl.BlockSpec((1, d), const),                    # bo (self)
            pl.BlockSpec((1, d), const),                    # ln1 gamma
            pl.BlockSpec((1, d), const),                    # ln1 beta
            pl.BlockSpec((d, d), const),                    # Wq (cross)
            pl.BlockSpec((d, 2 * d), const),                # Wkv (cross)
            pl.BlockSpec((1, 3 * d), const),                # b_qkv (cross)
            pl.BlockSpec((d, d), const),                    # Wo (cross)
            pl.BlockSpec((1, d), const),                    # bo (cross)
            pl.BlockSpec((1, d), const),                    # ln2 gamma
            pl.BlockSpec((1, d), const),                    # ln2 beta
            pl.BlockSpec((d, dff), const),                  # W1 (conv1 k=1)
            pl.BlockSpec((1, dff), const),                  # b1
            pl.BlockSpec((dff, d), const),                  # W2 (conv2 k=1)
            pl.BlockSpec((1, d), const),                    # b2
            pl.BlockSpec((1, d), const),                    # ln3 gamma
            pl.BlockSpec((1, d), const),                    # ln3 beta
        ],
        out_specs=pl.BlockSpec((1, l, d), lambda i: (i, 0, 0)),
        out_shape=jax.ShapeDtypeStruct((b, l, d), jnp.float32),
        compiler_params=pltpu.CompilerParams(
            dimension_semantics=("parallel",)),
    )(x, cross,
      wqkv1, bqkv1, wo1, bo1,
      params["ln1_g"].reshape(1, d), params["ln1_b"].reshape(1, d),
      wq2, wkv2, bqkv2, wo2, bo2,
      params["ln2_g"].reshape(1, d), params["ln2_b"].reshape(1, d),
      w1, fb1, w2, fb2,
      params["ln3_g"].reshape(1, d), params["ln3_b"].reshape(1, d))


# ------------------------------ Reference (JAX) -------------------------------

def _ref_ln(z, g, bta, eps=1e-5):
    mu = jnp.mean(z, axis=-1, keepdims=True)
    var = jnp.mean((z - mu) ** 2, axis=-1, keepdims=True)
    return (z - mu) / jnp.sqrt(var + eps) * g + bta


def _ref_mha(q_in, kv_in, p, n_heads):
    b, lq, d = q_in.shape
    s = kv_in.shape[1]
    dh = d // n_heads
    q = (q_in @ p["Wq"] + p["bq"]).reshape(b, lq, n_heads, dh).transpose(0, 2, 1, 3)
    k = (kv_in @ p["Wk"] + p["bk"]).reshape(b, s, n_heads, dh).transpose(0, 2, 1, 3)
    v = (kv_in @ p["Wv"] + p["bv"]).reshape(b, s, n_heads, dh).transpose(0, 2, 1, 3)
    sc = jnp.einsum("bhqd,bhkd->bhqk", q, k) / (dh ** 0.5)
    pr = jax.nn.softmax(sc, axis=-1)
    o = jnp.einsum("bhqk,bhkd->bhqd", pr, v).transpose(0, 2, 1, 3).reshape(b, lq, d)
    return o @ p["Wo"] + p["bo"]


def decoder_layer_reference(x, cross, params, n_heads):
    x1 = _ref_ln(x + _ref_mha(x, x, params["self_attn"], n_heads),
                 params["ln1_g"], params["ln1_b"])
    x2 = _ref_ln(x1 + _ref_mha(x1, cross, params["cross_attn"], n_heads),
                 params["ln2_g"], params["ln2_b"])
    h = jnp.maximum(x2 @ params["W1"] + params["b1"], 0.0)
    y = h @ params["W2"] + params["b2"]
    return _ref_ln(x2 + y, params["ln3_g"], params["ln3_b"])


# ------------------------------------ Main ------------------------------------

def make_params(key, d_model, d_ff):
    def attn_params(k):
        ks = jax.random.split(k, 4)
        return {
            "Wq": 0.02 * jax.random.normal(ks[0], (d_model, d_model), jnp.float32),
            "bq": jnp.zeros((d_model,), jnp.float32),
            "Wk": 0.02 * jax.random.normal(ks[1], (d_model, d_model), jnp.float32),
            "bk": jnp.zeros((d_model,), jnp.float32),
            "Wv": 0.02 * jax.random.normal(ks[2], (d_model, d_model), jnp.float32),
            "bv": jnp.zeros((d_model,), jnp.float32),
            "Wo": 0.02 * jax.random.normal(ks[3], (d_model, d_model), jnp.float32),
            "bo": jnp.zeros((d_model,), jnp.float32),
        }

    k_sa, k_ca, k_w1, k_w2, k_b1, k_b2 = jax.random.split(key, 6)
    return {
        "self_attn": attn_params(k_sa),
        "cross_attn": attn_params(k_ca),
        # Conv1d(d_model -> d_ff, k=1): weight (d_ff, d_model, 1) squeezed+T.
        "W1": 0.02 * jax.random.normal(k_w1, (d_model, d_ff), jnp.float32),
        "b1": 0.01 * jax.random.normal(k_b1, (d_ff,), jnp.float32),
        "W2": 0.02 * jax.random.normal(k_w2, (d_ff, d_model), jnp.float32),
        "b2": 0.01 * jax.random.normal(k_b2, (d_model,), jnp.float32),
        "ln1_g": jnp.ones((d_model,), jnp.float32),
        "ln1_b": jnp.zeros((d_model,), jnp.float32),
        "ln2_g": jnp.ones((d_model,), jnp.float32),
        "ln2_b": jnp.zeros((d_model,), jnp.float32),
        "ln3_g": jnp.ones((d_model,), jnp.float32),
        "ln3_b": jnp.zeros((d_model,), jnp.float32),
    }


if __name__ == "__main__":
    B, L, S, D_MODEL, N_HEADS = 2, 8, 8, 32, 4
    D_FF = 4 * D_MODEL  # d_ff = d_ff or 4 * d_model

    key = jax.random.PRNGKey(0)
    kx, kc, kp = jax.random.split(key, 3)
    x = jax.random.normal(kx, (B, L, D_MODEL), jnp.float32)
    cross = jax.random.normal(kc, (B, S, D_MODEL), jnp.float32)
    params = make_params(kp, D_MODEL, D_FF)

    out = decoder_layer_forward(x, cross, params, N_HEADS)
    out = jax.block_until_ready(out)

    ref = decoder_layer_reference(x, cross, params, N_HEADS)
    assert out.shape == (B, L, D_MODEL)
    # bf16 matmul operands + approx reciprocal => compare loosely vs f32 ref.
    assert jnp.allclose(out, ref, atol=3e-2, rtol=3e-2), (
        float(jnp.max(jnp.abs(out - ref))))

    print("KERNEL_OK")
</pallas_src>

<mosaic_0001>
module attributes {stable_mosaic.version = 11 : i64} {
  func.func @_decoder_layer_kernel(%arg0: i32, %arg1: memref<1x8x32xf32, #tpu.memory_space<vmem>>, %arg2: memref<1x8x32xf32, #tpu.memory_space<vmem>>, %arg3: memref<32x96xbf16, #tpu.memory_space<vmem>>, %arg4: memref<1x96xf32, #tpu.memory_space<vmem>>, %arg5: memref<32x32xbf16, #tpu.memory_space<vmem>>, %arg6: memref<1x32xf32, #tpu.memory_space<vmem>>, %arg7: memref<1x32xf32, #tpu.memory_space<vmem>>, %arg8: memref<1x32xf32, #tpu.memory_space<vmem>>, %arg9: memref<32x32xbf16, #tpu.memory_space<vmem>>, %arg10: memref<32x64xbf16, #tpu.memory_space<vmem>>, %arg11: memref<1x96xf32, #tpu.memory_space<vmem>>, %arg12: memref<32x32xbf16, #tpu.memory_space<vmem>>, %arg13: memref<1x32xf32, #tpu.memory_space<vmem>>, %arg14: memref<1x32xf32, #tpu.memory_space<vmem>>, %arg15: memref<1x32xf32, #tpu.memory_space<vmem>>, %arg16: memref<32x128xbf16, #tpu.memory_space<vmem>>, %arg17: memref<1x128xf32, #tpu.memory_space<vmem>>, %arg18: memref<128x32xbf16, #tpu.memory_space<vmem>>, %arg19: memref<1x32xf32, #tpu.memory_space<vmem>>, %arg20: memref<1x32xf32, #tpu.memory_space<vmem>>, %arg21: memref<1x32xf32, #tpu.memory_space<vmem>>, %arg22: memref<1x8x32xf32, #tpu.memory_space<vmem>>) attributes {dimension_semantics = [#tpu.dimension_semantics<parallel>], iteration_bounds = array<i64: 2>, scalar_prefetch = 0 : i64, scratch_operands = 0 : i64, tpu.core_type = #tpu.core_type<tc>, window_params = [{transform_indices = @transform_0, window_bounds = array<i64: 1, 8, 32>}, {transform_indices = @transform_1, window_bounds = array<i64: 1, 8, 32>}, {pipeline_mode = #tpu.pipeline_mode<synchronous>, transform_indices = @transform_2, window_bounds = array<i64: 32, 96>}, {pipeline_mode = #tpu.pipeline_mode<synchronous>, transform_indices = @transform_3, window_bounds = array<i64: 1, 96>}, {pipeline_mode = #tpu.pipeline_mode<synchronous>, transform_indices = @transform_4, window_bounds = array<i64: 32, 32>}, {pipeline_mode = #tpu.pipeline_mode<synchronous>, transform_indices = @transform_5, window_bounds = array<i64: 1, 32>}, {pipeline_mode = #tpu.pipeline_mode<synchronous>, transform_indices = @transform_6, window_bounds = array<i64: 1, 32>}, {pipeline_mode = #tpu.pipeline_mode<synchronous>, transform_indices = @transform_7, window_bounds = array<i64: 1, 32>}, {pipeline_mode = #tpu.pipeline_mode<synchronous>, transform_indices = @transform_8, window_bounds = array<i64: 32, 32>}, {pipeline_mode = #tpu.pipeline_mode<synchronous>, transform_indices = @transform_9, window_bounds = array<i64: 32, 64>}, {pipeline_mode = #tpu.pipeline_mode<synchronous>, transform_indices = @transform_10, window_bounds = array<i64: 1, 96>}, {pipeline_mode = #tpu.pipeline_mode<synchronous>, transform_indices = @transform_11, window_bounds = array<i64: 32, 32>}, {pipeline_mode = #tpu.pipeline_mode<synchronous>, transform_indices = @transform_12, window_bounds = array<i64: 1, 32>}, {pipeline_mode = #tpu.pipeline_mode<synchronous>, transform_indices = @transform_13, window_bounds = array<i64: 1, 32>}, {pipeline_mode = #tpu.pipeline_mode<synchronous>, transform_indices = @transform_14, window_bounds = array<i64: 1, 32>}, {pipeline_mode = #tpu.pipeline_mode<synchronous>, transform_indices = @transform_15, window_bounds = array<i64: 32, 128>}, {pipeline_mode = #tpu.pipeline_mode<synchronous>, transform_indices = @transform_16, window_bounds = array<i64: 1, 128>}, {pipeline_mode = #tpu.pipeline_mode<synchronous>, transform_indices = @transform_17, window_bounds = array<i64: 128, 32>}, {pipeline_mode = #tpu.pipeline_mode<synchronous>, transform_indices = @transform_18, window_bounds = array<i64: 1, 32>}, {pipeline_mode = #tpu.pipeline_mode<synchronous>, transform_indices = @transform_19, window_bounds = array<i64: 1, 32>}, {pipeline_mode = #tpu.pipeline_mode<synchronous>, transform_indices = @transform_20, window_bounds = array<i64: 1, 32>}, {transform_indices = @transform_21, window_bounds = array<i64: 1, 8, 32>}]} {
    %c0 = arith.constant 0 : index
    %c0_0 = arith.constant 0 : index
    %c0_1 = arith.constant 0 : index
    %0 = vector.load %arg1[%c0, %c0_0, %c0_1] : memref<1x8x32xf32, #tpu.memory_space<vmem>>, vector<1x8x32xf32>
    %1 = vector.shape_cast %0 : vector<1x8x32xf32> to vector<8x32xf32>
    %c0_2 = arith.constant 0 : index
    %c0_3 = arith.constant 0 : index
    %c0_4 = arith.constant 0 : index
    %2 = vector.load %arg2[%c0_2, %c0_3, %c0_4] : memref<1x8x32xf32, #tpu.memory_space<vmem>>, vector<1x8x32xf32>
    %3 = vector.shape_cast %2 : vector<1x8x32xf32> to vector<8x32xf32>
    %4 = arith.truncf %1 : vector<8x32xf32> to vector<8x32xbf16>
    %c0_5 = arith.constant 0 : index
    %c0_6 = arith.constant 0 : index
    %5 = vector.load %arg3[%c0_5, %c0_6] : memref<32x96xbf16, #tpu.memory_space<vmem>>, vector<32x96xbf16>
    %cst = arith.constant dense<0.000000e+00> : vector<8x96xf32>
    %6 = tpu.matmul %4, %5, %cst {dimension_numbers = #tpu.dot_dimension_numbers<[1], [0], [0], [1], [0, 0, 1, 1], [], []>} : vector<8x32xbf16>, vector<32x96xbf16>, vector<8x96xf32> -> vector<8x96xf32>
    %c0_7 = arith.constant 0 : index
    %c0_8 = arith.constant 0 : index
    %7 = vector.load %arg4[%c0_7, %c0_8] : memref<1x96xf32, #tpu.memory_space<vmem>>, vector<1x96xf32>
    %8 = vector.broadcast %7 : vector<1x96xf32> to vector<8x96xf32>
    %9 = arith.addf %6, %8 : vector<8x96xf32>
    %10 = vector.extract_strided_slice %9 {offsets = [0, 0], sizes = [8, 32], strides = [1, 1]} : vector<8x96xf32> to vector<8x32xf32>
    %11 = vector.extract_strided_slice %9 {offsets = [0, 32], sizes = [8, 32], strides = [1, 1]} : vector<8x96xf32> to vector<8x32xf32>
    %12 = vector.extract_strided_slice %9 {offsets = [0, 64], sizes = [8, 32], strides = [1, 1]} : vector<8x96xf32> to vector<8x32xf32>
    %13 = vector.extract_strided_slice %10 {offsets = [0, 0], sizes = [8, 8], strides = [1, 1]} : vector<8x32xf32> to vector<8x8xf32>
    %cst_9 = arith.constant 0.353553385 : f32
    %14 = vector.broadcast %cst_9 : f32 to vector<8x8xf32>
    %15 = arith.mulf %13, %14 : vector<8x8xf32>
    %16 = arith.truncf %15 : vector<8x8xf32> to vector<8x8xbf16>
    %17 = vector.extract_strided_slice %11 {offsets = [0, 0], sizes = [8, 8], strides = [1, 1]} : vector<8x32xf32> to vector<8x8xf32>
    %18 = arith.truncf %17 : vector<8x8xf32> to vector<8x8xbf16>
    %19 = vector.extract_strided_slice %12 {offsets = [0, 0], sizes = [8, 8], strides = [1, 1]} : vector<8x32xf32> to vector<8x8xf32>
    %20 = arith.truncf %19 : vector<8x8xf32> to vector<8x8xbf16>
    %21 = tpu.transpose %18, [1, 0] : vector<8x8xbf16> -> vector<8x8xbf16>
    %cst_10 = arith.constant dense<0.000000e+00> : vector<8x8xf32>
    %22 = tpu.matmul %16, %21, %cst_10 {dimension_numbers = #tpu.dot_dimension_numbers<[1], [0], [0], [1], [0, 0, 1, 1], [], []>} : vector<8x8xbf16>, vector<8x8xbf16>, vector<8x8xf32> -> vector<8x8xf32>
    %cst_11 = arith.constant dense<0xFF800000> : vector<8xf32>
    %23 = vector.multi_reduction <maximumf>, %22, %cst_11 [1] : vector<8x8xf32> to vector<8xf32>
    %24 = vector.shape_cast %23 : vector<8xf32> to vector<8x1xf32>
    %25 = vector.broadcast %24 : vector<8x1xf32> to vector<8x8xf32>
    %26 = arith.subf %22, %25 : vector<8x8xf32>
    %27 = math.exp %26 : vector<8x8xf32>
    %cst_12 = arith.constant dense<0.000000e+00> : vector<8xf32>
    %28 = vector.multi_reduction <add>, %27, %cst_12 [1] : vector<8x8xf32> to vector<8xf32>
    %29 = vector.shape_cast %28 : vector<8xf32> to vector<8x1xf32>
    %30 = tpu.reciprocal %29 {approx = true} : vector<8x1xf32> -> vector<8x1xf32>
    %31 = vector.broadcast %30 : vector<8x1xf32> to vector<8x8xf32>
    %32 = arith.mulf %27, %31 : vector<8x8xf32>
    %33 = arith.truncf %32 : vector<8x8xf32> to vector<8x8xbf16>
    %cst_13 = arith.constant dense<0.000000e+00> : vector<8x8xf32>
    %34 = tpu.matmul %33, %20, %cst_13 {dimension_numbers = #tpu.dot_dimension_numbers<[1], [0], [0], [1], [0, 0, 1, 1], [], []>} : vector<8x8xbf16>, vector<8x8xbf16>, vector<8x8xf32> -> vector<8x8xf32>
    %35 = vector.extract_strided_slice %10 {offsets = [0, 8], sizes = [8, 8], strides = [1, 1]} : vector<8x32xf32> to vector<8x8xf32>
    %cst_14 = arith.constant 0.353553385 : f32
    %36 = vector.broadcast %cst_14 : f32 to vector<8x8xf32>
    %37 = arith.mulf %35, %36 : vector<8x8xf32>
    %38 = arith.truncf %37 : vector<8x8xf32> to vector<8x8xbf16>
    %39 = vector.extract_strided_slice %11 {offsets = [0, 8], sizes = [8, 8], strides = [1, 1]} : vector<8x32xf32> to vector<8x8xf32>
    %40 = arith.truncf %39 : vector<8x8xf32> to vector<8x8xbf16>
    %41 = vector.extract_strided_slice %12 {offsets = [0, 8], sizes = [8, 8], strides = [1, 1]} : vector<8x32xf32> to vector<8x8xf32>
    %42 = arith.truncf %41 : vector<8x8xf32> to vector<8x8xbf16>
    %43 = tpu.transpose %40, [1, 0] : vector<8x8xbf16> -> vector<8x8xbf16>
    %cst_15 = arith.constant dense<0.000000e+00> : vector<8x8xf32>
    %44 = tpu.matmul %38, %43, %cst_15 {dimension_numbers = #tpu.dot_dimension_numbers<[1], [0], [0], [1], [0, 0, 1, 1], [], []>} : vector<8x8xbf16>, vector<8x8xbf16>, vector<8x8xf32> -> vector<8x8xf32>
    %cst_16 = arith.constant dense<0xFF800000> : vector<8xf32>
    %45 = vector.multi_reduction <maximumf>, %44, %cst_16 [1] : vector<8x8xf32> to vector<8xf32>
    %46 = vector.shape_cast %45 : vector<8xf32> to vector<8x1xf32>
    %47 = vector.broadcast %46 : vector<8x1xf32> to vector<8x8xf32>
    %48 = arith.subf %44, %47 : vector<8x8xf32>
    %49 = math.exp %48 : vector<8x8xf32>
    %cst_17 = arith.constant dense<0.000000e+00> : vector<8xf32>
    %50 = vector.multi_reduction <add>, %49, %cst_17 [1] : vector<8x8xf32> to vector<8xf32>
    %51 = vector.shape_cast %50 : vector<8xf32> to vector<8x1xf32>
    %52 = tpu.reciprocal %51 {approx = true} : vector<8x1xf32> -> vector<8x1xf32>
    %53 = vector.broadcast %52 : vector<8x1xf32> to vector<8x8xf32>
    %54 = arith.mulf %49, %53 : vector<8x8xf32>
    %55 = arith.truncf %54 : vector<8x8xf32> to vector<8x8xbf16>
    %cst_18 = arith.constant dense<0.000000e+00> : vector<8x8xf32>
    %56 = tpu.matmul %55, %42, %cst_18 {dimension_numbers = #tpu.dot_dimension_numbers<[1], [0], [0], [1], [0, 0, 1, 1], [], []>} : vector<8x8xbf16>, vector<8x8xbf16>, vector<8x8xf32> -> vector<8x8xf32>
    %57 = vector.extract_strided_slice %10 {offsets = [0, 16], sizes = [8, 8], strides = [1, 1]} : vector<8x32xf32> to vector<8x8xf32>
    %cst_19 = arith.constant 0.353553385 : f32
    %58 = vector.broadcast %cst_19 : f32 to vector<8x8xf32>
    %59 = arith.mulf %57, %58 : vector<8x8xf32>
    %60 = arith.truncf %59 : vector<8x8xf32> to vector<8x8xbf16>
    %61 = vector.extract_strided_slice %11 {offsets = [0, 16], sizes = [8, 8], strides = [1, 1]} : vector<8x32xf32> to vector<8x8xf32>
    %62 = arith.truncf %61 : vector<8x8xf32> to vector<8x8xbf16>
    %63 = vector.extract_strided_slice %12 {offsets = [0, 16], sizes = [8, 8], strides = [1, 1]} : vector<8x32xf32> to vector<8x8xf32>
    %64 = arith.truncf %63 : vector<8x8xf32> to vector<8x8xbf16>
    %65 = tpu.transpose %62, [1, 0] : vector<8x8xbf16> -> vector<8x8xbf16>
    %cst_20 = arith.constant dense<0.000000e+00> : vector<8x8xf32>
    %66 = tpu.matmul %60, %65, %cst_20 {dimension_numbers = #tpu.dot_dimension_numbers<[1], [0], [0], [1], [0, 0, 1, 1], [], []>} : vector<8x8xbf16>, vector<8x8xbf16>, vector<8x8xf32> -> vector<8x8xf32>
    %cst_21 = arith.constant dense<0xFF800000> : vector<8xf32>
    %67 = vector.multi_reduction <maximumf>, %66, %cst_21 [1] : vector<8x8xf32> to vector<8xf32>
    %68 = vector.shape_cast %67 : vector<8xf32> to vector<8x1xf32>
    %69 = vector.broadcast %68 : vector<8x1xf32> to vector<8x8xf32>
    %70 = arith.subf %66, %69 : vector<8x8xf32>
    %71 = math.exp %70 : vector<8x8xf32>
    %cst_22 = arith.constant dense<0.000000e+00> : vector<8xf32>
    %72 = vector.multi_reduction <add>, %71, %cst_22 [1] : vector<8x8xf32> to vector<8xf32>
    %73 = vector.shape_cast %72 : vector<8xf32> to vector<8x1xf32>
    %74 = tpu.reciprocal %73 {approx = true} : vector<8x1xf32> -> vector<8x1xf32>
    %75 = vector.broadcast %74 : vector<8x1xf32> to vector<8x8xf32>
    %76 = arith.mulf %71, %75 : vector<8x8xf32>
    %77 = arith.truncf %76 : vector<8x8xf32> to vector<8x8xbf16>
    %cst_23 = arith.constant dense<0.000000e+00> : vector<8x8xf32>
    %78 = tpu.matmul %77, %64, %cst_23 {dimension_numbers = #tpu.dot_dimension_numbers<[1], [0], [0], [1], [0, 0, 1, 1], [], []>} : vector<8x8xbf16>, vector<8x8xbf16>, vector<8x8xf32> -> vector<8x8xf32>
    %79 = vector.extract_strided_slice %10 {offsets = [0, 24], sizes = [8, 8], strides = [1, 1]} : vector<8x32xf32> to vector<8x8xf32>
    %cst_24 = arith.constant 0.353553385 : f32
    %80 = vector.broadcast %cst_24 : f32 to vector<8x8xf32>
    %81 = arith.mulf %79, %80 : vector<8x8xf32>
    %82 = arith.truncf %81 : vector<8x8xf32> to vector<8x8xbf16>
    %83 = vector.extract_strided_slice %11 {offsets = [0, 24], sizes = [8, 8], strides = [1, 1]} : vector<8x32xf32> to vector<8x8xf32>
    %84 = arith.truncf %83 : vector<8x8xf32> to vector<8x8xbf16>
    %85 = vector.extract_strided_slice %12 {offsets = [0, 24], sizes = [8, 8], strides = [1, 1]} : vector<8x32xf32> to vector<8x8xf32>
    %86 = arith.truncf %85 : vector<8x8xf32> to vector<8x8xbf16>
    %87 = tpu.transpose %84, [1, 0] : vector<8x8xbf16> -> vector<8x8xbf16>
    %cst_25 = arith.constant dense<0.000000e+00> : vector<8x8xf32>
    %88 = tpu.matmul %82, %87, %cst_25 {dimension_numbers = #tpu.dot_dimension_numbers<[1], [0], [0], [1], [0, 0, 1, 1], [], []>} : vector<8x8xbf16>, vector<8x8xbf16>, vector<8x8xf32> -> vector<8x8xf32>
    %cst_26 = arith.constant dense<0xFF800000> : vector<8xf32>
    %89 = vector.multi_reduction <maximumf>, %88, %cst_26 [1] : vector<8x8xf32> to vector<8xf32>
    %90 = vector.shape_cast %89 : vector<8xf32> to vector<8x1xf32>
    %91 = vector.broadcast %90 : vector<8x1xf32> to vector<8x8xf32>
    %92 = arith.subf %88, %91 : vector<8x8xf32>
    %93 = math.exp %92 : vector<8x8xf32>
    %cst_27 = arith.constant dense<0.000000e+00> : vector<8xf32>
    %94 = vector.multi_reduction <add>, %93, %cst_27 [1] : vector<8x8xf32> to vector<8xf32>
    %95 = vector.shape_cast %94 : vector<8xf32> to vector<8x1xf32>
    %96 = tpu.reciprocal %95 {approx = true} : vector<8x1xf32> -> vector<8x1xf32>
    %97 = vector.broadcast %96 : vector<8x1xf32> to vector<8x8xf32>
    %98 = arith.mulf %93, %97 : vector<8x8xf32>
    %99 = arith.truncf %98 : vector<8x8xf32> to vector<8x8xbf16>
    %cst_28 = arith.constant dense<0.000000e+00> : vector<8x8xf32>
    %100 = tpu.matmul %99, %86, %cst_28 {dimension_numbers = #tpu.dot_dimension_numbers<[1], [0], [0], [1], [0, 0, 1, 1], [], []>} : vector<8x8xbf16>, vector<8x8xbf16>, vector<8x8xf32> -> vector<8x8xf32>
    %101 = tpu.concatenate %34, %56, %78, %100 in 1 : vector<8x8xf32>, vector<8x8xf32>, vector<8x8xf32>, vector<8x8xf32> -> vector<8x32xf32>
    %102 = arith.truncf %101 : vector<8x32xf32> to vector<8x32xbf16>
    %c0_29 = arith.constant 0 : index
    %c0_30 = arith.constant 0 : index
    %103 = vector.load %arg5[%c0_29, %c0_30] : memref<32x32xbf16, #tpu.memory_space<vmem>>, vector<32x32xbf16>
    %cst_31 = arith.constant dense<0.000000e+00> : vector<8x32xf32>
    %104 = tpu.matmul %102, %103, %cst_31 {dimension_numbers = #tpu.dot_dimension_numbers<[1], [0], [0], [1], [0, 0, 1, 1], [], []>} : vector<8x32xbf16>, vector<32x32xbf16>, vector<8x32xf32> -> vector<8x32xf32>
    %c0_32 = arith.constant 0 : index
    %c0_33 = arith.constant 0 : index
    %105 = vector.load %arg6[%c0_32, %c0_33] : memref<1x32xf32, #tpu.memory_space<vmem>>, vector<1x32xf32>
    %106 = vector.broadcast %105 : vector<1x32xf32> to vector<8x32xf32>
    %107 = arith.addf %104, %106 : vector<8x32xf32>
    %108 = arith.addf %1, %107 : vector<8x32xf32>
    %c0_34 = arith.constant 0 : index
    %c0_35 = arith.constant 0 : index
    %109 = vector.load %arg7[%c0_34, %c0_35] : memref<1x32xf32, #tpu.memory_space<vmem>>, vector<1x32xf32>
    %c0_36 = arith.constant 0 : index
    %c0_37 = arith.constant 0 : index
    %110 = vector.load %arg8[%c0_36, %c0_37] : memref<1x32xf32, #tpu.memory_space<vmem>>, vector<1x32xf32>
    %cst_38 = arith.constant dense<0.000000e+00> : vector<8xf32>
    %111 = vector.multi_reduction <add>, %108, %cst_38 [1] : vector<8x32xf32> to vector<8xf32>
    %112 = vector.shape_cast %111 : vector<8xf32> to vector<8x1xf32>
    %cst_39 = arith.constant 3.200000e+01 : f32
    %113 = vector.broadcast %cst_39 : f32 to vector<8x1xf32>
    %114 = arith.divf %112, %113 : vector<8x1xf32>
    %115 = vector.broadcast %114 : vector<8x1xf32> to vector<8x32xf32>
    %116 = arith.subf %108, %115 : vector<8x32xf32>
    %117 = arith.mulf %116, %116 : vector<8x32xf32>
    %cst_40 = arith.constant dense<0.000000e+00> : vector<8xf32>
    %118 = vector.multi_reduction <add>, %117, %cst_40 [1] : vector<8x32xf32> to vector<8xf32>
    %119 = vector.shape_cast %118 : vector<8xf32> to vector<8x1xf32>
    %cst_41 = arith.constant 3.200000e+01 : f32
    %120 = vector.broadcast %cst_41 : f32 to vector<8x1xf32>
    %121 = arith.divf %119, %120 : vector<8x1xf32>
    %122 = vector.broadcast %114 : vector<8x1xf32> to vector<8x32xf32>
    %123 = arith.subf %108, %122 : vector<8x32xf32>
    %cst_42 = arith.constant 9.99999974E-6 : f32
    %124 = vector.broadcast %cst_42 : f32 to vector<8x1xf32>
    %125 = arith.addf %121, %124 : vector<8x1xf32>
    %126 = math.rsqrt %125 : vector<8x1xf32>
    %127 = vector.broadcast %126 : vector<8x1xf32> to vector<8x32xf32>
    %128 = arith.mulf %123, %127 : vector<8x32xf32>
    %129 = vector.broadcast %109 : vector<1x32xf32> to vector<8x32xf32>
    %130 = arith.mulf %128, %129 : vector<8x32xf32>
    %131 = vector.broadcast %110 : vector<1x32xf32> to vector<8x32xf32>
    %132 = arith.addf %130, %131 : vector<8x32xf32>
    %c0_43 = arith.constant 0 : index
    %c0_44 = arith.constant 0 : index
    %133 = vector.load %arg11[%c0_43, %c0_44] : memref<1x96xf32, #tpu.memory_space<vmem>>, vector<1x96xf32>
    %134 = arith.truncf %132 : vector<8x32xf32> to vector<8x32xbf16>
    %c0_45 = arith.constant 0 : index
    %c0_46 = arith.constant 0 : index
    %135 = vector.load %arg9[%c0_45, %c0_46] : memref<32x32xbf16, #tpu.memory_space<vmem>>, vector<32x32xbf16>
    %cst_47 = arith.constant dense<0.000000e+00> : vector<8x32xf32>
    %136 = tpu.matmul %134, %135, %cst_47 {dimension_numbers = #tpu.dot_dimension_numbers<[1], [0], [0], [1], [0, 0, 1, 1], [], []>} : vector<8x32xbf16>, vector<32x32xbf16>, vector<8x32xf32> -> vector<8x32xf32>
    %137 = vector.extract_strided_slice %133 {offsets = [0, 0], sizes = [1, 32], strides = [1, 1]} : vector<1x96xf32> to vector<1x32xf32>
    %138 = vector.broadcast %137 : vector<1x32xf32> to vector<8x32xf32>
    %139 = arith.addf %136, %138 : vector<8x32xf32>
    %140 = arith.truncf %3 : vector<8x32xf32> to vector<8x32xbf16>
    %c0_48 = arith.constant 0 : index
    %c0_49 = arith.constant 0 : index
    %141 = vector.load %arg10[%c0_48, %c0_49] : memref<32x64xbf16, #tpu.memory_space<vmem>>, vector<32x64xbf16>
    %cst_50 = arith.constant dense<0.000000e+00> : vector<8x64xf32>
    %142 = tpu.matmul %140, %141, %cst_50 {dimension_numbers = #tpu.dot_dimension_numbers<[1], [0], [0], [1], [0, 0, 1, 1], [], []>} : vector<8x32xbf16>, vector<32x64xbf16>, vector<8x64xf32> -> vector<8x64xf32>
    %143 = vector.extract_strided_slice %133 {offsets = [0, 32], sizes = [1, 64], strides = [1, 1]} : vector<1x96xf32> to vector<1x64xf32>
    %144 = vector.broadcast %143 : vector<1x64xf32> to vector<8x64xf32>
    %145 = arith.addf %142, %144 : vector<8x64xf32>
    %146 = vector.extract_strided_slice %145 {offsets = [0, 0], sizes = [8, 32], strides = [1, 1]} : vector<8x64xf32> to vector<8x32xf32>
    %147 = vector.extract_strided_slice %145 {offsets = [0, 32], sizes = [8, 32], strides = [1, 1]} : vector<8x64xf32> to vector<8x32xf32>
    %148 = vector.extract_strided_slice %139 {offsets = [0, 0], sizes = [8, 8], strides = [1, 1]} : vector<8x32xf32> to vector<8x8xf32>
    %cst_51 = arith.constant 0.353553385 : f32
    %149 = vector.broadcast %cst_51 : f32 to vector<8x8xf32>
    %150 = arith.mulf %148, %149 : vector<8x8xf32>
    %151 = arith.truncf %150 : vector<8x8xf32> to vector<8x8xbf16>
    %152 = vector.extract_strided_slice %146 {offsets = [0, 0], sizes = [8, 8], strides = [1, 1]} : vector<8x32xf32> to vector<8x8xf32>
    %153 = arith.truncf %152 : vector<8x8xf32> to vector<8x8xbf16>
    %154 = vector.extract_strided_slice %147 {offsets = [0, 0], sizes = [8, 8], strides = [1, 1]} : vector<8x32xf32> to vector<8x8xf32>
    %155 = arith.truncf %154 : vector<8x8xf32> to vector<8x8xbf16>
    %156 = tpu.transpose %153, [1, 0] : vector<8x8xbf16> -> vector<8x8xbf16>
    %cst_52 = arith.constant dense<0.000000e+00> : vector<8x8xf32>
    %157 = tpu.matmul %151, %156, %cst_52 {dimension_numbers = #tpu.dot_dimension_numbers<[1], [0], [0], [1], [0, 0, 1, 1], [], []>} : vector<8x8xbf16>, vector<8x8xbf16>, vector<8x8xf32> -> vector<8x8xf32>
    %cst_53 = arith.constant dense<0xFF800000> : vector<8xf32>
    %158 = vector.multi_reduction <maximumf>, %157, %cst_53 [1] : vector<8x8xf32> to vector<8xf32>
    %159 = vector.shape_cast %158 : vector<8xf32> to vector<8x1xf32>
    %160 = vector.broadcast %159 : vector<8x1xf32> to vector<8x8xf32>
    %161 = arith.subf %157, %160 : vector<8x8xf32>
    %162 = math.exp %161 : vector<8x8xf32>
    %cst_54 = arith.constant dense<0.000000e+00> : vector<8xf32>
    %163 = vector.multi_reduction <add>, %162, %cst_54 [1] : vector<8x8xf32> to vector<8xf32>
    %164 = vector.shape_cast %163 : vector<8xf32> to vector<8x1xf32>
    %165 = tpu.reciprocal %164 {approx = true} : vector<8x1xf32> -> vector<8x1xf32>
    %166 = vector.broadcast %165 : vector<8x1xf32> to vector<8x8xf32>
    %167 = arith.mulf %162, %166 : vector<8x8xf32>
    %168 = arith.truncf %167 : vector<8x8xf32> to vector<8x8xbf16>
    %cst_55 = arith.constant dense<0.000000e+00> : vector<8x8xf32>
    %169 = tpu.matmul %168, %155, %cst_55 {dimension_numbers = #tpu.dot_dimension_numbers<[1], [0], [0], [1], [0, 0, 1, 1], [], []>} : vector<8x8xbf16>, vector<8x8xbf16>, vector<8x8xf32> -> vector<8x8xf32>
    %170 = vector.extract_strided_slice %139 {offsets = [0, 8], sizes = [8, 8], strides = [1, 1]} : vector<8x32xf32> to vector<8x8xf32>
    %cst_56 = arith.constant 0.353553385 : f32
    %171 = vector.broadcast %cst_56 : f32 to vector<8x8xf32>
    %172 = arith.mulf %170, %171 : vector<8x8xf32>
    %173 = arith.truncf %172 : vector<8x8xf32> to vector<8x8xbf16>
    %174 = vector.extract_strided_slice %146 {offsets = [0, 8], sizes = [8, 8], strides = [1, 1]} : vector<8x32xf32> to vector<8x8xf32>
    %175 = arith.truncf %174 : vector<8x8xf32> to vector<8x8xbf16>
    %176 = vector.extract_strided_slice %147 {offsets = [0, 8], sizes = [8, 8], strides = [1, 1]} : vector<8x32xf32> to vector<8x8xf32>
    %177 = arith.truncf %176 : vector<8x8xf32> to vector<8x8xbf16>
    %178 = tpu.transpose %175, [1, 0] : vector<8x8xbf16> -> vector<8x8xbf16>
    %cst_57 = arith.constant dense<0.000000e+00> : vector<8x8xf32>
    %179 = tpu.matmul %173, %178, %cst_57 {dimension_numbers = #tpu.dot_dimension_numbers<[1], [0], [0], [1], [0, 0, 1, 1], [], []>} : vector<8x8xbf16>, vector<8x8xbf16>, vector<8x8xf32> -> vector<8x8xf32>
    %cst_58 = arith.constant dense<0xFF800000> : vector<8xf32>
    %180 = vector.multi_reduction <maximumf>, %179, %cst_58 [1] : vector<8x8xf32> to vector<8xf32>
    %181 = vector.shape_cast %180 : vector<8xf32> to vector<8x1xf32>
    %182 = vector.broadcast %181 : vector<8x1xf32> to vector<8x8xf32>
    %183 = arith.subf %179, %182 : vector<8x8xf32>
    %184 = math.exp %183 : vector<8x8xf32>
    %cst_59 = arith.constant dense<0.000000e+00> : vector<8xf32>
    %185 = vector.multi_reduction <add>, %184, %cst_59 [1] : vector<8x8xf32> to vector<8xf32>
    %186 = vector.shape_cast %185 : vector<8xf32> to vector<8x1xf32>
    %187 = tpu.reciprocal %186 {approx = true} : vector<8x1xf32> -> vector<8x1xf32>
    %188 = vector.broadcast %187 : vector<8x1xf32> to vector<8x8xf32>
    %189 = arith.mulf %184, %188 : vector<8x8xf32>
    %190 = arith.truncf %189 : vector<8x8xf32> to vector<8x8xbf16>
    %cst_60 = arith.constant dense<0.000000e+00> : vector<8x8xf32>
    %191 = tpu.matmul %190, %177, %cst_60 {dimension_numbers = #tpu.dot_dimension_numbers<[1], [0], [0], [1], [0, 0, 1, 1], [], []>} : vector<8x8xbf16>, vector<8x8xbf16>, vector<8x8xf32> -> vector<8x8xf32>
    %192 = vector.extract_strided_slice %139 {offsets = [0, 16], sizes = [8, 8], strides = [1, 1]} : vector<8x32xf32> to vector<8x8xf32>
    %cst_61 = arith.constant 0.353553385 : f32
    %193 = vector.broadcast %cst_61 : f32 to vector<8x8xf32>
    %194 = arith.mulf %192, %193 : vector<8x8xf32>
    %195 = arith.truncf %194 : vector<8x8xf32> to vector<8x8xbf16>
    %196 = vector.extract_strided_slice %146 {offsets = [0, 16], sizes = [8, 8], strides = [1, 1]} : vector<8x32xf32> to vector<8x8xf32>
    %197 = arith.truncf %196 : vector<8x8xf32> to vector<8x8xbf16>
    %198 = vector.extract_strided_slice %147 {offsets = [0, 16], sizes = [8, 8], strides = [1, 1]} : vector<8x32xf32> to vector<8x8xf32>
    %199 = arith.truncf %198 : vector<8x8xf32> to vector<8x8xbf16>
    %200 = tpu.transpose %197, [1, 0] : vector<8x8xbf16> -> vector<8x8xbf16>
    %cst_62 = arith.constant dense<0.000000e+00> : vector<8x8xf32>
    %201 = tpu.matmul %195, %200, %cst_62 {dimension_numbers = #tpu.dot_dimension_numbers<[1], [0], [0], [1], [0, 0, 1, 1], [], []>} : vector<8x8xbf16>, vector<8x8xbf16>, vector<8x8xf32> -> vector<8x8xf32>
    %cst_63 = arith.constant dense<0xFF800000> : vector<8xf32>
    %202 = vector.multi_reduction <maximumf>, %201, %cst_63 [1] : vector<8x8xf32> to vector<8xf32>
    %203 = vector.shape_cast %202 : vector<8xf32> to vector<8x1xf32>
    %204 = vector.broadcast %203 : vector<8x1xf32> to vector<8x8xf32>
    %205 = arith.subf %201, %204 : vector<8x8xf32>
    %206 = math.exp %205 : vector<8x8xf32>
    %cst_64 = arith.constant dense<0.000000e+00> : vector<8xf32>
    %207 = vector.multi_reduction <add>, %206, %cst_64 [1] : vector<8x8xf32> to vector<8xf32>
    %208 = vector.shape_cast %207 : vector<8xf32> to vector<8x1xf32>
    %209 = tpu.reciprocal %208 {approx = true} : vector<8x1xf32> -> vector<8x1xf32>
    %210 = vector.broadcast %209 : vector<8x1xf32> to vector<8x8xf32>
    %211 = arith.mulf %206, %210 : vector<8x8xf32>
    %212 = arith.truncf %211 : vector<8x8xf32> to vector<8x8xbf16>
    %cst_65 = arith.constant dense<0.000000e+00> : vector<8x8xf32>
    %213 = tpu.matmul %212, %199, %cst_65 {dimension_numbers = #tpu.dot_dimension_numbers<[1], [0], [0], [1], [0, 0, 1, 1], [], []>} : vector<8x8xbf16>, vector<8x8xbf16>, vector<8x8xf32> -> vector<8x8xf32>
    %214 = vector.extract_strided_slice %139 {offsets = [0, 24], sizes = [8, 8], strides = [1, 1]} : vector<8x32xf32> to vector<8x8xf32>
    %cst_66 = arith.constant 0.353553385 : f32
    %215 = vector.broadcast %cst_66 : f32 to vector<8x8xf32>
    %216 = arith.mulf %214, %215 : vector<8x8xf32>
    %217 = arith.truncf %216 : vector<8x8xf32> to vector<8x8xbf16>
    %218 = vector.extract_strided_slice %146 {offsets = [0, 24], sizes = [8, 8], strides = [1, 1]} : vector<8x32xf32> to vector<8x8xf32>
    %219 = arith.truncf %218 : vector<8x8xf32> to vector<8x8xbf16>
    %220 = vector.extract_strided_slice %147 {offsets = [0, 24], sizes = [8, 8], strides = [1, 1]} : vector<8x32xf32> to vector<8x8xf32>
    %221 = arith.truncf %220 : vector<8x8xf32> to vector<8x8xbf16>
    %222 = tpu.transpose %219, [1, 0] : vector<8x8xbf16> -> vector<8x8xbf16>
    %cst_67 = arith.constant dense<0.000000e+00> : vector<8x8xf32>
    %223 = tpu.matmul %217, %222, %cst_67 {dimension_numbers = #tpu.dot_dimension_numbers<[1], [0], [0], [1], [0, 0, 1, 1], [], []>} : vector<8x8xbf16>, vector<8x8xbf16>, vector<8x8xf32> -> vector<8x8xf32>
    %cst_68 = arith.constant dense<0xFF800000> : vector<8xf32>
    %224 = vector.multi_reduction <maximumf>, %223, %cst_68 [1] : vector<8x8xf32> to vector<8xf32>
    %225 = vector.shape_cast %224 : vector<8xf32> to vector<8x1xf32>
    %226 = vector.broadcast %225 : vector<8x1xf32> to vector<8x8xf32>
    %227 = arith.subf %223, %226 : vector<8x8xf32>
    %228 = math.exp %227 : vector<8x8xf32>
    %cst_69 = arith.constant dense<0.000000e+00> : vector<8xf32>
    %229 = vector.multi_reduction <add>, %228, %cst_69 [1] : vector<8x8xf32> to vector<8xf32>
    %230 = vector.shape_cast %229 : vector<8xf32> to vector<8x1xf32>
    %231 = tpu.reciprocal %230 {approx = true} : vector<8x1xf32> -> vector<8x1xf32>
    %232 = vector.broadcast %231 : vector<8x1xf32> to vector<8x8xf32>
    %233 = arith.mulf %228, %232 : vector<8x8xf32>
    %234 = arith.truncf %233 : vector<8x8xf32> to vector<8x8xbf16>
    %cst_70 = arith.constant dense<0.000000e+00> : vector<8x8xf32>
    %235 = tpu.matmul %234, %221, %cst_70 {dimension_numbers = #tpu.dot_dimension_numbers<[1], [0], [0], [1], [0, 0, 1, 1], [], []>} : vector<8x8xbf16>, vector<8x8xbf16>, vector<8x8xf32> -> vector<8x8xf32>
    %236 = tpu.concatenate %169, %191, %213, %235 in 1 : vector<8x8xf32>, vector<8x8xf32>, vector<8x8xf32>, vector<8x8xf32> -> vector<8x32xf32>
    %237 = arith.truncf %236 : vector<8x32xf32> to vector<8x32xbf16>
    %c0_71 = arith.constant 0 : index
    %c0_72 = arith.constant 0 : index
    %238 = vector.load %arg12[%c0_71, %c0_72] : memref<32x32xbf16, #tpu.memory_space<vmem>>, vector<32x32xbf16>
    %cst_73 = arith.constant dense<0.000000e+00> : vector<8x32xf32>
    %239 = tpu.matmul %237, %238, %cst_73 {dimension_numbers = #tpu.dot_dimension_numbers<[1], [0], [0], [1], [0, 0, 1, 1], [], []>} : vector<8x32xbf16>, vector<32x32xbf16>, vector<8x32xf32> -> vector<8x32xf32>
    %c0_74 = arith.constant 0 : index
    %c0_75 = arith.constant 0 : index
    %240 = vector.load %arg13[%c0_74, %c0_75] : memref<1x32xf32, #tpu.memory_space<vmem>>, vector<1x32xf32>
    %241 = vector.broadcast %240 : vector<1x32xf32> to vector<8x32xf32>
    %242 = arith.addf %239, %241 : vector<8x32xf32>
    %243 = arith.addf %132, %242 : vector<8x32xf32>
    %c0_76 = arith.constant 0 : index
    %c0_77 = arith.constant 0 : index
    %244 = vector.load %arg14[%c0_76, %c0_77] : memref<1x32xf32, #tpu.memory_space<vmem>>, vector<1x32xf32>
    %c0_78 = arith.constant 0 : index
    %c0_79 = arith.constant 0 : index
    %245 = vector.load %arg15[%c0_78, %c0_79] : memref<1x32xf32, #tpu.memory_space<vmem>>, vector<1x32xf32>
    %cst_80 = arith.constant dense<0.000000e+00> : vector<8xf32>
    %246 = vector.multi_reduction <add>, %243, %cst_80 [1] : vector<8x32xf32> to vector<8xf32>
    %247 = vector.shape_cast %246 : vector<8xf32> to vector<8x1xf32>
    %cst_81 = arith.constant 3.200000e+01 : f32
    %248 = vector.broadcast %cst_81 : f32 to vector<8x1xf32>
    %249 = arith.divf %247, %248 : vector<8x1xf32>
    %250 = vector.broadcast %249 : vector<8x1xf32> to vector<8x32xf32>
    %251 = arith.subf %243, %250 : vector<8x32xf32>
    %252 = arith.mulf %251, %251 : vector<8x32xf32>
    %cst_82 = arith.constant dense<0.000000e+00> : vector<8xf32>
    %253 = vector.multi_reduction <add>, %252, %cst_82 [1] : vector<8x32xf32> to vector<8xf32>
    %254 = vector.shape_cast %253 : vector<8xf32> to vector<8x1xf32>
    %cst_83 = arith.constant 3.200000e+01 : f32
    %255 = vector.broadcast %cst_83 : f32 to vector<8x1xf32>
    %256 = arith.divf %254, %255 : vector<8x1xf32>
    %257 = vector.broadcast %249 : vector<8x1xf32> to vector<8x32xf32>
    %258 = arith.subf %243, %257 : vector<8x32xf32>
    %cst_84 = arith.constant 9.99999974E-6 : f32
    %259 = vector.broadcast %cst_84 : f32 to vector<8x1xf32>
    %260 = arith.addf %256, %259 : vector<8x1xf32>
    %261 = math.rsqrt %260 : vector<8x1xf32>
    %262 = vector.broadcast %261 : vector<8x1xf32> to vector<8x32xf32>
    %263 = arith.mulf %258, %262 : vector<8x32xf32>
    %264 = vector.broadcast %244 : vector<1x32xf32> to vector<8x32xf32>
    %265 = arith.mulf %263, %264 : vector<8x32xf32>
    %266 = vector.broadcast %245 : vector<1x32xf32> to vector<8x32xf32>
    %267 = arith.addf %265, %266 : vector<8x32xf32>
    %268 = arith.truncf %267 : vector<8x32xf32> to vector<8x32xbf16>
    %c0_85 = arith.constant 0 : index
    %c0_86 = arith.constant 0 : index
    %269 = vector.load %arg16[%c0_85, %c0_86] : memref<32x128xbf16, #tpu.memory_space<vmem>>, vector<32x128xbf16>
    %cst_87 = arith.constant dense<0.000000e+00> : vector<8x128xf32>
    %270 = tpu.matmul %268, %269, %cst_87 {dimension_numbers = #tpu.dot_dimension_numbers<[1], [0], [0], [1], [0, 0, 1, 1], [], []>} : vector<8x32xbf16>, vector<32x128xbf16>, vector<8x128xf32> -> vector<8x128xf32>
    %c0_88 = arith.constant 0 : index
    %c0_89 = arith.constant 0 : index
    %271 = vector.load %arg17[%c0_88, %c0_89] : memref<1x128xf32, #tpu.memory_space<vmem>>, vector<1x128xf32>
    %272 = vector.broadcast %271 : vector<1x128xf32> to vector<8x128xf32>
    %273 = arith.addf %270, %272 : vector<8x128xf32>
    %cst_90 = arith.constant 0.000000e+00 : f32
    %274 = vector.broadcast %cst_90 : f32 to vector<8x128xf32>
    %275 = arith.maximumf %273, %274 : vector<8x128xf32>
    %276 = arith.truncf %275 : vector<8x128xf32> to vector<8x128xbf16>
    %c0_91 = arith.constant 0 : index
    %c0_92 = arith.constant 0 : index
    %277 = vector.load %arg18[%c0_91, %c0_92] : memref<128x32xbf16, #tpu.memory_space<vmem>>, vector<128x32xbf16>
    %cst_93 = arith.constant dense<0.000000e+00> : vector<8x32xf32>
    %278 = tpu.matmul %276, %277, %cst_93 {dimension_numbers = #tpu.dot_dimension_numbers<[1], [0], [0], [1], [0, 0, 1, 1], [], []>} : vector<8x128xbf16>, vector<128x32xbf16>, vector<8x32xf32> -> vector<8x32xf32>
    %c0_94 = arith.constant 0 : index
    %c0_95 = arith.constant 0 : index
    %279 = vector.load %arg19[%c0_94, %c0_95] : memref<1x32xf32, #tpu.memory_space<vmem>>, vector<1x32xf32>
    %280 = vector.broadcast %279 : vector<1x32xf32> to vector<8x32xf32>
    %281 = arith.addf %278, %280 : vector<8x32xf32>
    %282 = arith.addf %267, %281 : vector<8x32xf32>
    %c0_96 = arith.constant 0 : index
    %c0_97 = arith.constant 0 : index
    %283 = vector.load %arg20[%c0_96, %c0_97] : memref<1x32xf32, #tpu.memory_space<vmem>>, vector<1x32xf32>
    %c0_98 = arith.constant 0 : index
    %c0_99 = arith.constant 0 : index
    %284 = vector.load %arg21[%c0_98, %c0_99] : memref<1x32xf32, #tpu.memory_space<vmem>>, vector<1x32xf32>
    %cst_100 = arith.constant dense<0.000000e+00> : vector<8xf32>
    %285 = vector.multi_reduction <add>, %282, %cst_100 [1] : vector<8x32xf32> to vector<8xf32>
    %286 = vector.shape_cast %285 : vector<8xf32> to vector<8x1xf32>
    %cst_101 = arith.constant 3.200000e+01 : f32
    %287 = vector.broadcast %cst_101 : f32 to vector<8x1xf32>
    %288 = arith.divf %286, %287 : vector<8x1xf32>
    %289 = vector.broadcast %288 : vector<8x1xf32> to vector<8x32xf32>
    %290 = arith.subf %282, %289 : vector<8x32xf32>
    %291 = arith.mulf %290, %290 : vector<8x32xf32>
    %cst_102 = arith.constant dense<0.000000e+00> : vector<8xf32>
    %292 = vector.multi_reduction <add>, %291, %cst_102 [1] : vector<8x32xf32> to vector<8xf32>
    %293 = vector.shape_cast %292 : vector<8xf32> to vector<8x1xf32>
    %cst_103 = arith.constant 3.200000e+01 : f32
    %294 = vector.broadcast %cst_103 : f32 to vector<8x1xf32>
    %295 = arith.divf %293, %294 : vector<8x1xf32>
    %296 = vector.broadcast %288 : vector<8x1xf32> to vector<8x32xf32>
    %297 = arith.subf %282, %296 : vector<8x32xf32>
    %cst_104 = arith.constant 9.99999974E-6 : f32
    %298 = vector.broadcast %cst_104 : f32 to vector<8x1xf32>
    %299 = arith.addf %295, %298 : vector<8x1xf32>
    %300 = math.rsqrt %299 : vector<8x1xf32>
    %301 = vector.broadcast %300 : vector<8x1xf32> to vector<8x32xf32>
    %302 = arith.mulf %297, %301 : vector<8x32xf32>
    %303 = vector.broadcast %283 : vector<1x32xf32> to vector<8x32xf32>
    %304 = arith.mulf %302, %303 : vector<8x32xf32>
    %305 = vector.broadcast %284 : vector<1x32xf32> to vector<8x32xf32>
    %306 = arith.addf %304, %305 : vector<8x32xf32>
    %c0_105 = arith.constant 0 : index
    %c0_106 = arith.constant 0 : index
    %c0_107 = arith.constant 0 : index
    %307 = vector.load %arg22[%c0_105, %c0_106, %c0_107] : memref<1x8x32xf32, #tpu.memory_space<vmem>>, vector<1x8x32xf32>
    %308 = vector.shape_cast %307 : vector<1x8x32xf32> to vector<8x32xf32>
    %309 = vector.shape_cast %306 : vector<8x32xf32> to vector<1x8x32xf32>
    tpu.vector_store %arg22[%c0_105, %c0_106, %c0_107], %309 {strides = array<i32>} : memref<1x8x32xf32, #tpu.memory_space<vmem>>, vector<1x8x32xf32>,
    return
  }
  func.func @transform_0(%arg0: i32) -> (i32, i32, i32) {
    %c0_i32 = arith.constant 0 : i32
    %c0_i32_0 = arith.constant 0 : i32
    %c0_i32_1 = arith.constant 0 : i32
    return %arg0, %c0_i32, %c0_i32_0 : i32, i32, i32
  }
  func.func @transform_1(%arg0: i32) -> (i32, i32, i32) {
    %c0_i32 = arith.constant 0 : i32
    %c0_i32_0 = arith.constant 0 : i32
    %c0_i32_1 = arith.constant 0 : i32
    return %arg0, %c0_i32, %c0_i32_0 : i32, i32, i32
  }
  func.func @transform_2(%arg0: i32) -> (i32, i32) {
    %c0_i32 = arith.constant 0 : i32
    %c0_i32_0 = arith.constant 0 : i32
    %c0_i32_1 = arith.constant 0 : i32
    return %c0_i32, %c0_i32_0 : i32, i32
  }
  func.func @transform_3(%arg0: i32) -> (i32, i32) {
    %c0_i32 = arith.constant 0 : i32
    %c0_i32_0 = arith.constant 0 : i32
    %c0_i32_1 = arith.constant 0 : i32
    return %c0_i32, %c0_i32_0 : i32, i32
  }
  func.func @transform_4(%arg0: i32) -> (i32, i32) {
    %c0_i32 = arith.constant 0 : i32
    %c0_i32_0 = arith.constant 0 : i32
    %c0_i32_1 = arith.constant 0 : i32
    return %c0_i32, %c0_i32_0 : i32, i32
  }
  func.func @transform_5(%arg0: i32) -> (i32, i32) {
    %c0_i32 = arith.constant 0 : i32
    %c0_i32_0 = arith.constant 0 : i32
    %c0_i32_1 = arith.constant 0 : i32
    return %c0_i32, %c0_i32_0 : i32, i32
  }
  func.func @transform_6(%arg0: i32) -> (i32, i32) {
    %c0_i32 = arith.constant 0 : i32
    %c0_i32_0 = arith.constant 0 : i32
    %c0_i32_1 = arith.constant 0 : i32
    return %c0_i32, %c0_i32_0 : i32, i32
  }
  func.func @transform_7(%arg0: i32) -> (i32, i32) {
    %c0_i32 = arith.constant 0 : i32
    %c0_i32_0 = arith.constant 0 : i32
    %c0_i32_1 = arith.constant 0 : i32
    return %c0_i32, %c0_i32_0 : i32, i32
  }
  func.func @transform_8(%arg0: i32) -> (i32, i32) {
    %c0_i32 = arith.constant 0 : i32
    %c0_i32_0 = arith.constant 0 : i32
    %c0_i32_1 = arith.constant 0 : i32
    return %c0_i32, %c0_i32_0 : i32, i32
  }
  func.func @transform_9(%arg0: i32) -> (i32, i32) {
    %c0_i32 = arith.constant 0 : i32
    %c0_i32_0 = arith.constant 0 : i32
    %c0_i32_1 = arith.constant 0 : i32
    return %c0_i32, %c0_i32_0 : i32, i32
  }
  func.func @transform_10(%arg0: i32) -> (i32, i32) {
    %c0_i32 = arith.constant 0 : i32
    %c0_i32_0 = arith.constant 0 : i32
    %c0_i32_1 = arith.constant 0 : i32
    return %c0_i32, %c0_i32_0 : i32, i32
  }
  func.func @transform_11(%arg0: i32) -> (i32, i32) {
    %c0_i32 = arith.constant 0 : i32
    %c0_i32_0 = arith.constant 0 : i32
    %c0_i32_1 = arith.constant 0 : i32
    return %c0_i32, %c0_i32_0 : i32, i32
  }
  func.func @transform_12(%arg0: i32) -> (i32, i32) {
    %c0_i32 = arith.constant 0 : i32
    %c0_i32_0 = arith.constant 0 : i32
    %c0_i32_1 = arith.constant 0 : i32
    return %c0_i32, %c0_i32_0 : i32, i32
  }
  func.func @transform_13(%arg0: i32) -> (i32, i32) {
    %c0_i32 = arith.constant 0 : i32
    %c0_i32_0 = arith.constant 0 : i32
    %c0_i32_1 = arith.constant 0 : i32
    return %c0_i32, %c0_i32_0 : i32, i32
  }
  func.func @transform_14(%arg0: i32) -> (i32, i32) {
    %c0_i32 = arith.constant 0 : i32
    %c0_i32_0 = arith.constant 0 : i32
    %c0_i32_1 = arith.constant 0 : i32
    return %c0_i32, %c0_i32_0 : i32, i32
  }
  func.func @transform_15(%arg0: i32) -> (i32, i32) {
    %c0_i32 = arith.constant 0 : i32
    %c0_i32_0 = arith.constant 0 : i32
    %c0_i32_1 = arith.constant 0 : i32
    return %c0_i32, %c0_i32_0 : i32, i32
  }
  func.func @transform_16(%arg0: i32) -> (i32, i32) {
    %c0_i32 = arith.constant 0 : i32
    %c0_i32_0 = arith.constant 0 : i32
    %c0_i32_1 = arith.constant 0 : i32
    return %c0_i32, %c0_i32_0 : i32, i32
  }
  func.func @transform_17(%arg0: i32) -> (i32, i32) {
    %c0_i32 = arith.constant 0 : i32
    %c0_i32_0 = arith.constant 0 : i32
    %c0_i32_1 = arith.constant 0 : i32
    return %c0_i32, %c0_i32_0 : i32, i32
  }
  func.func @transform_18(%arg0: i32) -> (i32, i32) {
    %c0_i32 = arith.constant 0 : i32
    %c0_i32_0 = arith.constant 0 : i32
    %c0_i32_1 = arith.constant 0 : i32
    return %c0_i32, %c0_i32_0 : i32, i32
  }
  func.func @transform_19(%arg0: i32) -> (i32, i32) {
    %c0_i32 = arith.constant 0 : i32
    %c0_i32_0 = arith.constant 0 : i32
    %c0_i32_1 = arith.constant 0 : i32
    return %c0_i32, %c0_i32_0 : i32, i32
  }
  func.func @transform_20(%arg0: i32) -> (i32, i32) {
    %c0_i32 = arith.constant 0 : i32
    %c0_i32_0 = arith.constant 0 : i32
    %c0_i32_1 = arith.constant 0 : i32
    return %c0_i32, %c0_i32_0 : i32, i32
  }
  func.func @transform_21(%arg0: i32) -> (i32, i32, i32) {
    %c0_i32 = arith.constant 0 : i32
    %c0_i32_0 = arith.constant 0 : i32
    %c0_i32_1 = arith.constant 0 : i32
    return %arg0, %c0_i32, %c0_i32_0 : i32, i32, i32
  }
}

</mosaic_0001>

<llo_original>
// kernel: tpu_custom_call.1
$region0: #{tpu_custom_call.1}
  #allocation0 [shape = 'u32[]', space=smem, size = 0x4, offset = 0x4, fixed_abs, tag = 'smem constant byte address 0x4 - core index']
  #allocation1 [shape = 'u32[72,128]{1,0:T(1,128)}', space=vmem, size = 0x9000, scoped, tag = 'internal scratch']
  %s0 = inlined_call_operand.vmem [shape: f32[2,8,32], index: 0, kind: input, shape index: {}]
  %s1 = inlined_call_operand.vmem [shape: f32[2,8,32], index: 1, kind: input, shape index: {}]
  %s2 = inlined_call_operand.vmem [shape: bf16[32,96], index: 2, kind: input, shape index: {}]
  %s3 = inlined_call_operand.hbm [shape: f32[1,96], index: 3, kind: input, shape index: {}]
  %s4 = inlined_call_operand.vmem [shape: bf16[32,32], index: 4, kind: input, shape index: {}]
  %s5 = inlined_call_operand.hbm [shape: f32[1,32], index: 5, kind: input, shape index: {}]
  %s6 = inlined_call_operand.hbm [shape: f32[1,32], index: 6, kind: input, shape index: {}]
  %s7 = inlined_call_operand.hbm [shape: f32[1,32], index: 7, kind: input, shape index: {}]
  %s8 = inlined_call_operand.vmem [shape: bf16[32,32], index: 8, kind: input, shape index: {}]
  %s9 = inlined_call_operand.hbm [shape: bf16[32,64], index: 9, kind: input, shape index: {}]
  %s10 = inlined_call_operand.hbm [shape: f32[1,96], index: 10, kind: input, shape index: {}]
  %s11 = inlined_call_operand.hbm [shape: bf16[32,32], index: 11, kind: input, shape index: {}]
  %s12 = inlined_call_operand.hbm [shape: f32[1,32], index: 12, kind: input, shape index: {}]
  %s13 = inlined_call_operand.hbm [shape: f32[1,32], index: 13, kind: input, shape index: {}]
  %s14 = inlined_call_operand.hbm [shape: f32[1,32], index: 14, kind: input, shape index: {}]
  %s15 = inlined_call_operand.hbm [shape: bf16[32,128], index: 15, kind: input, shape index: {}]
  %s16 = inlined_call_operand.hbm [shape: f32[1,128], index: 16, kind: input, shape index: {}]
  %s17 = inlined_call_operand.vmem [shape: bf16[128,32], index: 17, kind: input, shape index: {}]
  %s18 = inlined_call_operand.vmem [shape: f32[1,32], index: 18, kind: input, shape index: {}]
  %s19 = inlined_call_operand.hbm [shape: f32[1,32], index: 19, kind: input, shape index: {}]
  %s20 = inlined_call_operand.vmem [shape: f32[1,32], index: 20, kind: input, shape index: {}]
  %s21 = inlined_call_operand.hbm [shape: f32[2,8,32], index: 21, kind: output, shape index: {}]
  %s22 = sld [smem:[#allocation0]]
  $region169: #{tpu_custom_call.1} parent=0
    _
  %s24 = ssub.s32 1, %s22
  %s25 = scalar_select 0, %s24, %s22
  $region1: #{tpu_custom_call.1} parent=0
    #allocation2 [shape = 'u8[512]{0}', space=vmem, size = 0x400, scoped, tag = 'input window, operand 3, single buffered']
    #allocation3 [shape = 's32[2]{0}', space=sflag, size = 0x8, scoped, tag = 'scoped memory for tpu_custom_call.1']
    #allocation4 [shape = 's32[2]{0}', space=sflag, size = 0x8, scoped, tag = 'scoped memory for tpu_custom_call.1']
    #allocation5 [shape = 'u8[512]{0}', space=vmem, size = 0x400, scoped, tag = 'input window, operand 5, single buffered']
    #allocation6 [shape = 's32[1]{0}', space=sflag, size = 0x4, scoped, tag = 'scoped memory for tpu_custom_call.1']
    #allocation7 [shape = 'u8[512]{0}', space=vmem, size = 0x400, scoped, tag = 'input window, operand 6, single buffered']
    #allocation8 [shape = 'u8[512]{0}', space=vmem, size = 0x400, scoped, tag = 'input window, operand 7, single buffered']
    #allocation9 [shape = 's32[1]{0}', space=sflag, size = 0x4, scoped, tag = 'scoped memory for tpu_custom_call.1']
    #allocation10 [shape = 'u8[8192]{0}', space=vmem, size = 0x2000, scoped, tag = 'input window, operand 9, single buffered']
    #allocation11 [shape = 'u8[512]{0}', space=vmem, size = 0x400, scoped, tag = 'input window, operand 10, single buffered']
    #allocation12 [shape = 's32[1]{0}', space=sflag, size = 0x4, scoped, tag = 'scoped memory for tpu_custom_call.1']
    #allocation13 [shape = 'u8[8192]{0}', space=vmem, size = 0x2000, scoped, tag = 'input window, operand 11, single buffered']
    #allocation14 [shape = 'u8[512]{0}', space=vmem, size = 0x400, scoped, tag = 'input window, operand 12, single buffered']
    #allocation15 [shape = 's32[1]{0}', space=sflag, size = 0x4, scoped, tag = 'scoped memory for tpu_custom_call.1']
    #allocation16 [shape = 'u8[512]{0}', space=vmem, size = 0x400, scoped, tag = 'input window, operand 13, single buffered']
    #allocation17 [shape = 'u8[512]{0}', space=vmem, size = 0x400, scoped, tag = 'input window, operand 14, single buffered']
    #allocation18 [shape = 's32[1]{0}', space=sflag, size = 0x4, scoped, tag = 'scoped memory for tpu_custom_call.1']
    #allocation19 [shape = 'u8[8192]{0}', space=vmem, size = 0x2000, scoped, tag = 'input window, operand 15, single buffered']
    #allocation20 [shape = 'u8[512]{0}', space=vmem, size = 0x400, scoped, tag = 'input window, operand 16, single buffered']
    #allocation21 [shape = 's32[1]{0}', space=sflag, size = 0x4, scoped, tag = 'scoped memory for tpu_custom_call.1']
    #allocation22 [shape = 'u8[512]{0}', space=vmem, size = 0x400, scoped, tag = 'input window, operand 19, single buffered']
    #allocation23 [shape = 'u8[8192]{0}', space=vmem, size = 0x2000, scoped, tag = 'output window, operand 0']
    %26 = vsyncpa [#allocation3], 0
    %27 = vsyncpa [#allocation6], 0
    %28 = vsyncpa [#allocation9], 0
    %29 = vsyncpa [#allocation12], 0
    %30 = vsyncpa [#allocation15], 0
    %31 = vsyncpa [#allocation18], 0
    %32 = vsyncpa [#allocation21], 0
    %33 = vsyncpa [#allocation4], 0
    %s34 = scalar_lea.sflag [#allocation4], 1
    %35 = vsyncpa %s34, 0
    loop: start=0, step=1, limit=4
    $region2: #{tpu_custom_call.1} parent=1 // loop_pre_header
      _
    $region3: #{tpu_custom_call.1} parent=1 // loop_header
      %s37 = sphi 0, %s41
      %p38 = scmp.ge.s32.totalorder %s37, 4
      %s47 = sphi 0, %s49
      %s50 = sphi 0, %s47
      %s51 = sphi 0, %s50
      %s67 = sphi 0, %s51
      %s73 = sphi 0, %s75
      %s76 = sphi 0, %s73
      %s77 = sphi 0, %s76
      %s93 = sphi 0, %s77
      %s97 = sphi 0, %s97
      %s99 = sphi 0, %s97
      %s100 = sphi 0, %s99
      %s114 = sphi 0, %s100
      %s118 = sphi 0, %s118
      %s120 = sphi 0, %s118
      %s121 = sphi 0, %s120
      %s135 = sphi 0, %s121
      %s139 = sphi 0, %s139
      %s141 = sphi 0, %s139
      %s142 = sphi 0, %s141
      %s156 = sphi 0, %s142
      %s160 = sphi 0, %s160
      %s162 = sphi 0, %s160
      %s163 = sphi 0, %s162
      %s177 = sphi 0, %s163
      %s181 = sphi 0, %s181
      %s183 = sphi 0, %s181
      %s184 = sphi 0, %s183
      %s198 = sphi 0, %s184
      %s202 = sphi 0, %s202
      %s204 = sphi 0, %s202
      %s205 = sphi 0, %s204
      %s219 = sphi 0, %s205
      %s223 = sphi 0, %s223
      %s225 = sphi 0, %s223
      %s226 = sphi 0, %s225
      %s240 = sphi 0, %s226
      %s244 = sphi 0, %s244
      %s246 = sphi 0, %s244
      %s247 = sphi 0, %s246
      %s261 = sphi 0, %s247
      %s265 = sphi 0, %s265
      %s267 = sphi 0, %s265
      %s268 = sphi 0, %s267
      %s282 = sphi 0, %s268
      %s286 = sphi 0, %s286
      %s288 = sphi 0, %s286
      %s289 = sphi 0, %s288
      %s303 = sphi 0, %s289
      %s307 = sphi 0, %s307
      %s309 = sphi 0, %s307
      %s310 = sphi 0, %s309
      %s324 = sphi 0, %s310
      %s328 = sphi 0, %s328
      %s330 = sphi 0, %s328
      %s331 = sphi 0, %s330
      %s345 = sphi 0, %s331
      %s349 = sphi 0, %s349
      %s351 = sphi 0, %s349
      %s352 = sphi 0, %s351
      %s366 = sphi 0, %s352
      %s370 = sphi 0, %s370
      %s372 = sphi 0, %s370
      %s373 = sphi 0, %s372
      %s387 = sphi 0, %s373
      %s391 = sphi 0, %s391
      %s393 = sphi 0, %s391
      %s394 = sphi 0, %s393
      %s408 = sphi 0, %s394
      %s412 = sphi 0, %s412
      %s414 = sphi 0, %s412
      %s415 = sphi 0, %s414
      %s429 = sphi 0, %s415
      %s433 = sphi 0, %s433
      %s435 = sphi 0, %s433
      %s436 = sphi 0, %s435
      %s450 = sphi 0, %s436
      %s454 = sphi 0, %s454
      %s456 = sphi 0, %s454
      %s457 = sphi 0, %s456
      %s471 = sphi 0, %s457
      %s475 = sphi 0, %s475
      %s477 = sphi 0, %s475
      %s478 = sphi 0, %s477
      %s492 = sphi 0, %s478
      %s498 = sphi 0, %s500
      %s501 = sphi 0, %s498
      %s502 = sphi 0, %s501
      %s518 = sphi 0, %s502
    $region4: #{tpu_custom_call.1} parent=1 // loop_header_branch
      %40 = sbr.rel (%p38) target = $region8
    $region5: #{tpu_custom_call.1} parent=1 // loop_body
      %s42 = ssub.s32 %s37, 1
      %s43 = ssub.s32 %s37, 2
      %s44 = sadd.s32 %s37, 1
      %s45 = ssub.s32 %s37, %s44
      %p46 = scmp.eq.s32.totalorder %s45, 0
      %s48 = sadd.s32 %s47, 1
      %s49 = scalar_select %p46, %s47, %s48
      %p52 = pneg %p46
      %p53 = scmp.eq.s32.totalorder %s37, 1
      %p54 = por %p52, %p53
      %p55 = scmp.ne.s32.totalorder %s47, %s50
      %p56 = scmp.eq.s32.totalorder %s37, 0
      %p57 = por %p55, %p56
      %p58 = scmp.ne.s32.totalorder %s47, %s50
      %p59 = scmp.eq.s32.totalorder %s42, 1
      %p60 = por %p58, %p59
      %p61 = scmp.ne.s32.totalorder %s50, %s51
      %p62 = scmp.eq.s32.totalorder %s42, 0
      %p63 = por %p61, %p62
      %p64 = scmp.ne.s32.totalorder %s50, %s51
      %p65 = scmp.eq.s32.totalorder %s43, 1
      %p66 = por %p64, %p65
      %p68 = scmp.ne.s32.totalorder %s51, %s67
      %p69 = scmp.eq.s32.totalorder %s43, 0
      %p70 = por %p68, %p69
      %s71 = ssub.s32 %s37, %s44
      %p72 = scmp.eq.s32.totalorder %s71, 0
      %s74 = sadd.s32 %s73, 1
      %s75 = scalar_select %p72, %s73, %s74
      %p78 = pneg %p72
      %p79 = scmp.eq.s32.totalorder %s37, 1
      %p80 = por %p78, %p79
      %p81 = scmp.ne.s32.totalorder %s73, %s76
      %p82 = scmp.eq.s32.totalorder %s37, 0
      %p83 = por %p81, %p82
      %p84 = scmp.ne.s32.totalorder %s73, %s76
      %p85 = scmp.eq.s32.totalorder %s42, 1
      %p86 = por %p84, %p85
      %p87 = scmp.ne.s32.totalorder %s76, %s77
      %p88 = scmp.eq.s32.totalorder %s42, 0
      %p89 = por %p87, %p88
      %p90 = scmp.ne.s32.totalorder %s76, %s77
      %p91 = scmp.eq.s32.totalorder %s43, 1
      %p92 = por %p90, %p91
      %p94 = scmp.ne.s32.totalorder %s77, %s93
      %p95 = scmp.eq.s32.totalorder %s43, 0
      %p96 = por %p94, %p95
      %s98 = sadd.s32 %s97, 1
      %p101 = scmp.eq.s32.totalorder %s37, 1
      %p102 = scmp.ne.s32.totalorder %s97, %s99
      %p103 = scmp.eq.s32.totalorder %s37, 0
      %p104 = por %p102, %p103
      %p105 = scmp.ne.s32.totalorder %s97, %s99
      %p106 = scmp.eq.s32.totalorder %s42, 1
      %p107 = por %p105, %p106
      %p108 = scmp.ne.s32.totalorder %s99, %s100
      %p109 = scmp.eq.s32.totalorder %s42, 0
      %p110 = por %p108, %p109
      %p111 = scmp.ne.s32.totalorder %s99, %s100
      %p112 = scmp.eq.s32.totalorder %s43, 1
      %p113 = por %p111, %p112
      %p115 = scmp.ne.s32.totalorder %s100, %s114
      %p116 = scmp.eq.s32.totalorder %s43, 0
      %p117 = por %p115, %p116
      %s119 = sadd.s32 %s118, 1
      %p122 = scmp.eq.s32.totalorder %s37, 1
      %p123 = scmp.ne.s32.totalorder %s118, %s120
      %p124 = scmp.eq.s32.totalorder %s37, 0
      %p125 = por %p123, %p124
      %p126 = scmp.ne.s32.totalorder %s118, %s120
      %p127 = scmp.eq.s32.totalorder %s42, 1
      %p128 = por %p126, %p127
      %p129 = scmp.ne.s32.totalorder %s120, %s121
      %p130 = scmp.eq.s32.totalorder %s42, 0
      %p131 = por %p129, %p130
      %p132 = scmp.ne.s32.totalorder %s120, %s121
      %p133 = scmp.eq.s32.totalorder %s43, 1
      %p134 = por %p132, %p133
      %p136 = scmp.ne.s32.totalorder %s121, %s135
      %p137 = scmp.eq.s32.totalorder %s43, 0
      %p138 = por %p136, %p137
      %s140 = sadd.s32 %s139, 1
      %p143 = scmp.eq.s32.totalorder %s37, 1
      %p144 = scmp.ne.s32.totalorder %s139, %s141
      %p145 = scmp.eq.s32.totalorder %s37, 0
      %p146 = por %p144, %p145
      %p147 = scmp.ne.s32.totalorder %s139, %s141
      %p148 = scmp.eq.s32.totalorder %s42, 1
      %p149 = por %p147, %p148
      %p150 = scmp.ne.s32.totalorder %s141, %s142
      %p151 = scmp.eq.s32.totalorder %s42, 0
      %p152 = por %p150, %p151
      %p153 = scmp.ne.s32.totalorder %s141, %s142
      %p154 = scmp.eq.s32.totalorder %s43, 1
      %p155 = por %p153, %p154
      %p157 = scmp.ne.s32.totalorder %s142, %s156
      %p158 = scmp.eq.s32.totalorder %s43, 0
      %p159 = por %p157, %p158
      %s161 = sadd.s32 %s160, 1
      %p164 = scmp.eq.s32.totalorder %s37, 1
      %p165 = scmp.ne.s32.totalorder %s160, %s162
      %p166 = scmp.eq.s32.totalorder %s37, 0
      %p167 = por %p165, %p166
      %p168 = scmp.ne.s32.totalorder %s160, %s162
      %p169 = scmp.eq.s32.totalorder %s42, 1
      %p170 = por %p168, %p169
      %p171 = scmp.ne.s32.totalorder %s162, %s163
      %p172 = scmp.eq.s32.totalorder %s42, 0
      %p173 = por %p171, %p172
      %p174 = scmp.ne.s32.totalorder %s162, %s163
      %p175 = scmp.eq.s32.totalorder %s43, 1
      %p176 = por %p174, %p175
      %p178 = scmp.ne.s32.totalorder %s163, %s177
      %p179 = scmp.eq.s32.totalorder %s43, 0
      %p180 = por %p178, %p179
      %s182 = sadd.s32 %s181, 1
      %p185 = scmp.eq.s32.totalorder %s37, 1
      %p186 = scmp.ne.s32.totalorder %s181, %s183
      %p187 = scmp.eq.s32.totalorder %s37, 0
      %p188 = por %p186, %p187
      %p189 = scmp.ne.s32.totalorder %s181, %s183
      %p190 = scmp.eq.s32.totalorder %s42, 1
      %p191 = por %p189, %p190
      %p192 = scmp.ne.s32.totalorder %s183, %s184
      %p193 = scmp.eq.s32.totalorder %s42, 0
      %p194 = por %p192, %p193
      %p195 = scmp.ne.s32.totalorder %s183, %s184
      %p196 = scmp.eq.s32.totalorder %s43, 1
      %p197 = por %p195, %p196
      %p199 = scmp.ne.s32.totalorder %s184, %s198
      %p200 = scmp.eq.s32.totalorder %s43, 0
      %p201 = por %p199, %p200
      %s203 = sadd.s32 %s202, 1
      %p206 = scmp.eq.s32.totalorder %s37, 1
      %p207 = scmp.ne.s32.totalorder %s202, %s204
      %p208 = scmp.eq.s32.totalorder %s37, 0
      %p209 = por %p207, %p208
      %p210 = scmp.ne.s32.totalorder %s202, %s204
      %p211 = scmp.eq.s32.totalorder %s42, 1
      %p212 = por %p210, %p211
      %p213 = scmp.ne.s32.totalorder %s204, %s205
      %p214 = scmp.eq.s32.totalorder %s42, 0
      %p215 = por %p213, %p214
      %p216 = scmp.ne.s32.totalorder %s204, %s205
      %p217 = scmp.eq.s32.totalorder %s43, 1
      %p218 = por %p216, %p217
      %p220 = scmp.ne.s32.totalorder %s205, %s219
      %p221 = scmp.eq.s32.totalorder %s43, 0
      %p222 = por %p220, %p221
      %s224 = sadd.s32 %s223, 1
      %p227 = scmp.eq.s32.totalorder %s37, 1
      %p228 = scmp.ne.s32.totalorder %s223, %s225
      %p229 = scmp.eq.s32.totalorder %s37, 0
      %p230 = por %p228, %p229
      %p231 = scmp.ne.s32.totalorder %s223, %s225
      %p232 = scmp.eq.s32.totalorder %s42, 1
      %p233 = por %p231, %p232
      %p234 = scmp.ne.s32.totalorder %s225, %s226
      %p235 = scmp.eq.s32.totalorder %s42, 0
      %p236 = por %p234, %p235
      %p237 = scmp.ne.s32.totalorder %s225, %s226
      %p238 = scmp.eq.s32.totalorder %s43, 1
      %p239 = por %p237, %p238
      %p241 = scmp.ne.s32.totalorder %s226, %s240
      %p242 = scmp.eq.s32.totalorder %s43, 0
      %p243 = por %p241, %p242
      %s245 = sadd.s32 %s244, 1
      %p248 = scmp.eq.s32.totalorder %s37, 1
      %p249 = scmp.ne.s32.totalorder %s244, %s246
      %p250 = scmp.eq.s32.totalorder %s37, 0
      %p251 = por %p249, %p250
      %p252 = scmp.ne.s32.totalorder %s244, %s246
      %p253 = scmp.eq.s32.totalorder %s42, 1
      %p254 = por %p252, %p253
      %p255 = scmp.ne.s32.totalorder %s246, %s247
      %p256 = scmp.eq.s32.totalorder %s42, 0
      %p257 = por %p255, %p256
      %p258 = scmp.ne.s32.totalorder %s246, %s247
      %p259 = scmp.eq.s32.totalorder %s43, 1
      %p260 = por %p258, %p259
      %p262 = scmp.ne.s32.totalorder %s247, %s261
      %p263 = scmp.eq.s32.totalorder %s43, 0
      %p264 = por %p262, %p263
      %s266 = sadd.s32 %s265, 1
      %p269 = scmp.eq.s32.totalorder %s37, 1
      %p270 = scmp.ne.s32.totalorder %s265, %s267
      %p271 = scmp.eq.s32.totalorder %s37, 0
      %p272 = por %p270, %p271
      %p273 = scmp.ne.s32.totalorder %s265, %s267
      %p274 = scmp.eq.s32.totalorder %s42, 1
      %p275 = por %p273, %p274
      %p276 = scmp.ne.s32.totalorder %s267, %s268
      %p277 = scmp.eq.s32.totalorder %s42, 0
      %p278 = por %p276, %p277
      %p279 = scmp.ne.s32.totalorder %s267, %s268
      %p280 = scmp.eq.s32.totalorder %s43, 1
      %p281 = por %p279, %p280
      %p283 = scmp.ne.s32.totalorder %s268, %s282
      %p284 = scmp.eq.s32.totalorder %s43, 0
      %p285 = por %p283, %p284
      %s287 = sadd.s32 %s286, 1
      %p290 = scmp.eq.s32.totalorder %s37, 1
      %p291 = scmp.ne.s32.totalorder %s286, %s288
      %p292 = scmp.eq.s32.totalorder %s37, 0
      %p293 = por %p291, %p292
      %p294 = scmp.ne.s32.totalorder %s286, %s288
      %p295 = scmp.eq.s32.totalorder %s42, 1
      %p296 = por %p294, %p295
      %p297 = scmp.ne.s32.totalorder %s288, %s289
      %p298 = scmp.eq.s32.totalorder %s42, 0
      %p299 = por %p297, %p298
      %p300 = scmp.ne.s32.totalorder %s288, %s289
      %p301 = scmp.eq.s32.totalorder %s43, 1
      %p302 = por %p300, %p301
      %p304 = scmp.ne.s32.totalorder %s289, %s303
      %p305 = scmp.eq.s32.totalorder %s43, 0
      %p306 = por %p304, %p305
      %s308 = sadd.s32 %s307, 1
      %p311 = scmp.eq.s32.totalorder %s37, 1
      %p312 = scmp.ne.s32.totalorder %s307, %s309
      %p313 = scmp.eq.s32.totalorder %s37, 0
      %p314 = por %p312, %p313
      %p315 = scmp.ne.s32.totalorder %s307, %s309
      %p316 = scmp.eq.s32.totalorder %s42, 1
      %p317 = por %p315, %p316
      %p318 = scmp.ne.s32.totalorder %s309, %s310
      %p319 = scmp.eq.s32.totalorder %s42, 0
      %p320 = por %p318, %p319
      %p321 = scmp.ne.s32.totalorder %s309, %s310
      %p322 = scmp.eq.s32.totalorder %s43, 1
      %p323 = por %p321, %p322
      %p325 = scmp.ne.s32.totalorder %s310, %s324
      %p326 = scmp.eq.s32.totalorder %s43, 0
      %p327 = por %p325, %p326
      %s329 = sadd.s32 %s328, 1
      %p332 = scmp.eq.s32.totalorder %s37, 1
      %p333 = scmp.ne.s32.totalorder %s328, %s330
      %p334 = scmp.eq.s32.totalorder %s37, 0
      %p335 = por %p333, %p334
      %p336 = scmp.ne.s32.totalorder %s328, %s330
      %p337 = scmp.eq.s32.totalorder %s42, 1
      %p338 = por %p336, %p337
      %p339 = scmp.ne.s32.totalorder %s330, %s331
      %p340 = scmp.eq.s32.totalorder %s42, 0
      %p341 = por %p339, %p340
      %p342 = scmp.ne.s32.totalorder %s330, %s331
      %p343 = scmp.eq.s32.totalorder %s43, 1
      %p344 = por %p342, %p343
      %p346 = scmp.ne.s32.totalorder %s331, %s345
      %p347 = scmp.eq.s32.totalorder %s43, 0
      %p348 = por %p346, %p347
      %s350 = sadd.s32 %s349, 1
      %p353 = scmp.eq.s32.totalorder %s37, 1
      %p354 = scmp.ne.s32.totalorder %s349, %s351
      %p355 = scmp.eq.s32.totalorder %s37, 0
      %p356 = por %p354, %p355
      %p357 = scmp.ne.s32.totalorder %s349, %s351
      %p358 = scmp.eq.s32.totalorder %s42, 1
      %p359 = por %p357, %p358
      %p360 = scmp.ne.s32.totalorder %s351, %s352
      %p361 = scmp.eq.s32.totalorder %s42, 0
      %p362 = por %p360, %p361
      %p363 = scmp.ne.s32.totalorder %s351, %s352
      %p364 = scmp.eq.s32.totalorder %s43, 1
      %p365 = por %p363, %p364
      %p367 = scmp.ne.s32.totalorder %s352, %s366
      %p368 = scmp.eq.s32.totalorder %s43, 0
      %p369 = por %p367, %p368
      %s371 = sadd.s32 %s370, 1
      %p374 = scmp.eq.s32.totalorder %s37, 1
      %p375 = scmp.ne.s32.totalorder %s370, %s372
      %p376 = scmp.eq.s32.totalorder %s37, 0
      %p377 = por %p375, %p376
      %p378 = scmp.ne.s32.totalorder %s370, %s372
      %p379 = scmp.eq.s32.totalorder %s42, 1
      %p380 = por %p378, %p379
      %p381 = scmp.ne.s32.totalorder %s372, %s373
      %p382 = scmp.eq.s32.totalorder %s42, 0
      %p383 = por %p381, %p382
      %p384 = scmp.ne.s32.totalorder %s372, %s373
      %p385 = scmp.eq.s32.totalorder %s43, 1
      %p386 = por %p384, %p385
      %p388 = scmp.ne.s32.totalorder %s373, %s387
      %p389 = scmp.eq.s32.totalorder %s43, 0
      %p390 = por %p388, %p389
      %s392 = sadd.s32 %s391, 1
      %p395 = scmp.eq.s32.totalorder %s37, 1
      %p396 = scmp.ne.s32.totalorder %s391, %s393
      %p397 = scmp.eq.s32.totalorder %s37, 0
      %p398 = por %p396, %p397
      %p399 = scmp.ne.s32.totalorder %s391, %s393
      %p400 = scmp.eq.s32.totalorder %s42, 1
      %p401 = por %p399, %p400
      %p402 = scmp.ne.s32.totalorder %s393, %s394
      %p403 = scmp.eq.s32.totalorder %s42, 0
      %p404 = por %p402, %p403
      %p405 = scmp.ne.s32.totalorder %s393, %s394
      %p406 = scmp.eq.s32.totalorder %s43, 1
      %p407 = por %p405, %p406
      %p409 = scmp.ne.s32.totalorder %s394, %s408
      %p410 = scmp.eq.s32.totalorder %s43, 0
      %p411 = por %p409, %p410
      %s413 = sadd.s32 %s412, 1
      %p416 = scmp.eq.s32.totalorder %s37, 1
      %p417 = scmp.ne.s32.totalorder %s412, %s414
      %p418 = scmp.eq.s32.totalorder %s37, 0
      %p419 = por %p417, %p418
      %p420 = scmp.ne.s32.totalorder %s412, %s414
      %p421 = scmp.eq.s32.totalorder %s42, 1
      %p422 = por %p420, %p421
      %p423 = scmp.ne.s32.totalorder %s414, %s415
      %p424 = scmp.eq.s32.totalorder %s42, 0
      %p425 = por %p423, %p424
      %p426 = scmp.ne.s32.totalorder %s414, %s415
      %p427 = scmp.eq.s32.totalorder %s43, 1
      %p428 = por %p426, %p427
      %p430 = scmp.ne.s32.totalorder %s415, %s429
      %p431 = scmp.eq.s32.totalorder %s43, 0
      %p432 = por %p430, %p431
      %s434 = sadd.s32 %s433, 1
      %p437 = scmp.eq.s32.totalorder %s37, 1
      %p438 = scmp.ne.s32.totalorder %s433, %s435
      %p439 = scmp.eq.s32.totalorder %s37, 0
      %p440 = por %p438, %p439
      %p441 = scmp.ne.s32.totalorder %s433, %s435
      %p442 = scmp.eq.s32.totalorder %s42, 1
      %p443 = por %p441, %p442
      %p444 = scmp.ne.s32.totalorder %s435, %s436
      %p445 = scmp.eq.s32.totalorder %s42, 0
      %p446 = por %p444, %p445
      %p447 = scmp.ne.s32.totalorder %s435, %s436
      %p448 = scmp.eq.s32.totalorder %s43, 1
      %p449 = por %p447, %p448
      %p451 = scmp.ne.s32.totalorder %s436, %s450
      %p452 = scmp.eq.s32.totalorder %s43, 0
      %p453 = por %p451, %p452
      %s455 = sadd.s32 %s454, 1
      %p458 = scmp.eq.s32.totalorder %s37, 1
      %p459 = scmp.ne.s32.totalorder %s454, %s456
      %p460 = scmp.eq.s32.totalorder %s37, 0
      %p461 = por %p459, %p460
      %p462 = scmp.ne.s32.totalorder %s454, %s456
      %p463 = scmp.eq.s32.totalorder %s42, 1
      %p464 = por %p462, %p463
      %p465 = scmp.ne.s32.totalorder %s456, %s457
      %p466 = scmp.eq.s32.totalorder %s42, 0
      %p467 = por %p465, %p466
      %p468 = scmp.ne.s32.totalorder %s456, %s457
      %p469 = scmp.eq.s32.totalorder %s43, 1
      %p470 = por %p468, %p469
      %p472 = scmp.ne.s32.totalorder %s457, %s471
      %p473 = scmp.eq.s32.totalorder %s43, 0
      %p474 = por %p472, %p473
      %s476 = sadd.s32 %s475, 1
      %p479 = scmp.eq.s32.totalorder %s37, 1
      %p480 = scmp.ne.s32.totalorder %s475, %s477
      %p481 = scmp.eq.s32.totalorder %s37, 0
      %p482 = por %p480, %p481
      %p483 = scmp.ne.s32.totalorder %s475, %s477
      %p484 = scmp.eq.s32.totalorder %s42, 1
      %p485 = por %p483, %p484
      %p486 = scmp.ne.s32.totalorder %s477, %s478
      %p487 = scmp.eq.s32.totalorder %s42, 0
      %p488 = por %p486, %p487
      %p489 = scmp.ne.s32.totalorder %s477, %s478
      %p490 = scmp.eq.s32.totalorder %s43, 1
      %p491 = por %p489, %p490
      %p493 = scmp.ne.s32.totalorder %s478, %s492
      %p494 = scmp.eq.s32.totalorder %s43, 0
      %p495 = por %p493, %p494
      %s496 = ssub.s32 %s37, %s44
      %p497 = scmp.eq.s32.totalorder %s496, 0
      %s499 = sadd.s32 %s498, 1
      %s500 = scalar_select %p497, %s498, %s499
      %p503 = pneg %p497
      %p504 = scmp.eq.s32.totalorder %s37, 1
      %p505 = por %p503, %p504
      %p506 = scmp.ne.s32.totalorder %s498, %s501
      %p507 = scmp.eq.s32.totalorder %s37, 0
      %p508 = por %p506, %p507
      %p509 = scmp.ne.s32.totalorder %s498, %s501
      %p510 = scmp.eq.s32.totalorder %s42, 1
      %p511 = por %p509, %p510
      %p512 = scmp.ne.s32.totalorder %s501, %s502
      %p513 = scmp.eq.s32.totalorder %s42, 0
      %p514 = por %p512, %p513
      %p515 = scmp.ne.s32.totalorder %s501, %s502
      %p516 = scmp.eq.s32.totalorder %s43, 1
      %p517 = por %p515, %p516
      %p519 = scmp.ne.s32.totalorder %s502, %s518
      %p520 = scmp.eq.s32.totalorder %s43, 0
      %p521 = por %p519, %p520
      %p522 = scmp.le.s32.totalorder 1, %s37
      %p523 = scmp.lt.s32.totalorder %s37, 3
      %p524 = pnand %p522, %p523
      %p525 = pneg %p524
      // Predicated region
      $region9: #{tpu_custom_call.1} parent=5 // pred_check
        _
      $region10: #{tpu_custom_call.1} parent=5 // pred_check_branch
        %527 = sbr.rel (%p524) target = $region12
      $region11: #{tpu_custom_call.1} parent=5 // pred_region
        %s528 = ssub.s32 %s37, 1
        // Predicated region
        $region13: #{tpu_custom_call.1} parent=11 // pred_check
          %p529 = pneg %p110
        $region14: #{tpu_custom_call.1} parent=11 // pred_check_branch
          %531 = sbr.rel (%p529) target = $region16
        $region15: #{tpu_custom_call.1} parent=11 // pred_region
          _
        $region16: #{tpu_custom_call.1} parent=11 // pred_fallthru
          _
        // Predicated region
        $region17: #{tpu_custom_call.1} parent=11 // pred_check
          %p532 = pneg %p131
        $region18: #{tpu_custom_call.1} parent=11 // pred_check_branch
          %534 = sbr.rel (%p532) target = $region20
        $region19: #{tpu_custom_call.1} parent=11 // pred_region
          %536 = vsyncadd [#allocation3], 0
          %s538 = sshll.u32 %s3, 4
          %s539 = int_to_ptr.hbm [resolvable:$true] %s538
          %s540 = sshll.u32 [#allocation2], 4
          %s541 = int_to_ptr.vmem [resolvable:$true] %s540
          %543 = dma.hbm_to_vmem [thread:$0]  %s539, 16, %s541, [#allocation3]
        $region20: #{tpu_custom_call.1} parent=11 // pred_fallthru
          _
        // Predicated region
        $region21: #{tpu_custom_call.1} parent=11 // pred_check
          %p544 = pneg %p152
        $region22: #{tpu_custom_call.1} parent=11 // pred_check_branch
          %546 = sbr.rel (%p544) target = $region24
        $region23: #{tpu_custom_call.1} parent=11 // pred_region
          _
        $region24: #{tpu_custom_call.1} parent=11 // pred_fallthru
          _
        // Predicated region
        $region25: #{tpu_custom_call.1} parent=11 // pred_check
          %p547 = pneg %p173
        $region26: #{tpu_custom_call.1} parent=11 // pred_check_branch
          %549 = sbr.rel (%p547) target = $region28
        $region27: #{tpu_custom_call.1} parent=11 // pred_region
          %551 = vsyncadd [#allocation6], 0
          %s553 = sshll.u32 %s5, 4
          %s554 = int_to_ptr.hbm [resolvable:$true] %s553
          %s555 = sshll.u32 [#allocation5], 4
          %s556 = int_to_ptr.vmem [resolvable:$true] %s555
          %558 = dma.hbm_to_vmem [thread:$0]  %s554, 16, %s556, [#allocation6]
        $region28: #{tpu_custom_call.1} parent=11 // pred_fallthru
          _
        // Predicated region
        $region29: #{tpu_custom_call.1} parent=11 // pred_check
          %p559 = pneg %p194
        $region30: #{tpu_custom_call.1} parent=11 // pred_check_branch
          %561 = sbr.rel (%p559) target = $region32
        $region31: #{tpu_custom_call.1} parent=11 // pred_region
          %563 = vsyncadd [#allocation6], 0
          %s565 = sshll.u32 %s6, 4
          %s566 = int_to_ptr.hbm [resolvable:$true] %s565
          %s567 = sshll.u32 [#allocation7], 4
          %s568 = int_to_ptr.vmem [resolvable:$true] %s567
          %570 = dma.hbm_to_vmem [thread:$0]  %s566, 16, %s568, [#allocation6]
        $region32: #{tpu_custom_call.1} parent=11 // pred_fallthru
          _
        // Predicated region
        $region33: #{tpu_custom_call.1} parent=11 // pred_check
          %p571 = pneg %p215
        $region34: #{tpu_custom_call.1} parent=11 // pred_check_branch
          %573 = sbr.rel (%p571) target = $region36
        $region35: #{tpu_custom_call.1} parent=11 // pred_region
          %575 = vsyncadd [#allocation9], 0
          %s577 = sshll.u32 %s7, 4
          %s578 = int_to_ptr.hbm [resolvable:$true] %s577
          %s579 = sshll.u32 [#allocation8], 4
          %s580 = int_to_ptr.vmem [resolvable:$true] %s579
          %582 = dma.hbm_to_vmem [thread:$0]  %s578, 16, %s580, [#allocation9]
        $region36: #{tpu_custom_call.1} parent=11 // pred_fallthru
          _
        // Predicated region
        $region37: #{tpu_custom_call.1} parent=11 // pred_check
          %p583 = pneg %p236
        $region38: #{tpu_custom_call.1} parent=11 // pred_check_branch
          %585 = sbr.rel (%p583) target = $region40
        $region39: #{tpu_custom_call.1} parent=11 // pred_region
          _
        $region40: #{tpu_custom_call.1} parent=11 // pred_fallthru
          _
        // Predicated region
        $region41: #{tpu_custom_call.1} parent=11 // pred_check
          %p586 = pneg %p257
        $region42: #{tpu_custom_call.1} parent=11 // pred_check_branch
          %588 = sbr.rel (%p586) target = $region44
        $region43: #{tpu_custom_call.1} parent=11 // pred_region
          %590 = vsyncadd [#allocation9], 0
          %s591 = sshll.u32 %s9, 4
          %s592 = int_to_ptr.hbm [resolvable:$true] %s591
          %s593 = sshll.u32 [#allocation10], 4
          %s594 = int_to_ptr.vmem [resolvable:$true] %s593
          %599 = dma.hbm_to_vmem [thread:$0]  %s592, 256, %s594, [#allocation9], 64, 64, 4
        $region44: #{tpu_custom_call.1} parent=11 // pred_fallthru
          _
        // Predicated region
        $region45: #{tpu_custom_call.1} parent=11 // pred_check
          %p600 = pneg %p278
        $region46: #{tpu_custom_call.1} parent=11 // pred_check_branch
          %602 = sbr.rel (%p600) target = $region48
        $region47: #{tpu_custom_call.1} parent=11 // pred_region
          %604 = vsyncadd [#allocation12], 0
          %s606 = sshll.u32 %s10, 4
          %s607 = int_to_ptr.hbm [resolvable:$true] %s606
          %s608 = sshll.u32 [#allocation11], 4
          %s609 = int_to_ptr.vmem [resolvable:$true] %s608
          %611 = dma.hbm_to_vmem [thread:$0]  %s607, 16, %s609, [#allocation12]
        $region48: #{tpu_custom_call.1} parent=11 // pred_fallthru
          _
        // Predicated region
        $region49: #{tpu_custom_call.1} parent=11 // pred_check
          %p612 = pneg %p299
        $region50: #{tpu_custom_call.1} parent=11 // pred_check_branch
          %614 = sbr.rel (%p612) target = $region52
        $region51: #{tpu_custom_call.1} parent=11 // pred_region
          %616 = vsyncadd [#allocation12], 0
          %s617 = sshll.u32 %s11, 4
          %s618 = int_to_ptr.hbm [resolvable:$true] %s617
          %s619 = sshll.u32 [#allocation13], 4
          %s620 = int_to_ptr.vmem [resolvable:$true] %s619
          %625 = dma.hbm_to_vmem [thread:$0]  %s618, 256, %s620, [#allocation12], 64, 64, 4
        $region52: #{tpu_custom_call.1} parent=11 // pred_fallthru
          _
        // Predicated region
        $region53: #{tpu_custom_call.1} parent=11 // pred_check
          %p626 = pneg %p320
        $region54: #{tpu_custom_call.1} parent=11 // pred_check_branch
          %628 = sbr.rel (%p626) target = $region56
        $region55: #{tpu_custom_call.1} parent=11 // pred_region
          %630 = vsyncadd [#allocation15], 0
          %s632 = sshll.u32 %s12, 4
          %s633 = int_to_ptr.hbm [resolvable:$true] %s632
          %s634 = sshll.u32 [#allocation14], 4
          %s635 = int_to_ptr.vmem [resolvable:$true] %s634
          %637 = dma.hbm_to_vmem [thread:$0]  %s633, 16, %s635, [#allocation15]
        $region56: #{tpu_custom_call.1} parent=11 // pred_fallthru
          _
        // Predicated region
        $region57: #{tpu_custom_call.1} parent=11 // pred_check
          %p638 = pneg %p341
        $region58: #{tpu_custom_call.1} parent=11 // pred_check_branch
          %640 = sbr.rel (%p638) target = $region60
        $region59: #{tpu_custom_call.1} parent=11 // pred_region
          %642 = vsyncadd [#allocation15], 0
          %s644 = sshll.u32 %s13, 4
          %s645 = int_to_ptr.hbm [resolvable:$true] %s644
          %s646 = sshll.u32 [#allocation16], 4
          %s647 = int_to_ptr.vmem [resolvable:$true] %s646
          %649 = dma.hbm_to_vmem [thread:$0]  %s645, 16, %s647, [#allocation15]
        $region60: #{tpu_custom_call.1} parent=11 // pred_fallthru
          _
        // Predicated region
        $region61: #{tpu_custom_call.1} parent=11 // pred_check
          %p650 = pneg %p362
        $region62: #{tpu_custom_call.1} parent=11 // pred_check_branch
          %652 = sbr.rel (%p650) target = $region64
        $region63: #{tpu_custom_call.1} parent=11 // pred_region
          %654 = vsyncadd [#allocation18], 0
          %s656 = sshll.u32 %s14, 4
          %s657 = int_to_ptr.hbm [resolvable:$true] %s656
          %s658 = sshll.u32 [#allocation17], 4
          %s659 = int_to_ptr.vmem [resolvable:$true] %s658
          %661 = dma.hbm_to_vmem [thread:$0]  %s657, 16, %s659, [#allocation18]
        $region64: #{tpu_custom_call.1} parent=11 // pred_fallthru
          _
        // Predicated region
        $region65: #{tpu_custom_call.1} parent=11 // pred_check
          %p662 = pneg %p383
        $region66: #{tpu_custom_call.1} parent=11 // pred_check_branch
          %664 = sbr.rel (%p662) target = $region68
        $region67: #{tpu_custom_call.1} parent=11 // pred_region
          %666 = vsyncadd [#allocation18], 0
          %s667 = sshll.u32 %s15, 4
          %s668 = int_to_ptr.hbm [resolvable:$true] %s667
          %s669 = sshll.u32 [#allocation19], 4
          %s670 = int_to_ptr.vmem [resolvable:$true] %s669
          %675 = dma.hbm_to_vmem [thread:$0]  %s668, 256, %s670, [#allocation18], 64, 64, 4
        $region68: #{tpu_custom_call.1} parent=11 // pred_fallthru
          _
        // Predicated region
        $region69: #{tpu_custom_call.1} parent=11 // pred_check
          %p676 = pneg %p404
        $region70: #{tpu_custom_call.1} parent=11 // pred_check_branch
          %678 = sbr.rel (%p676) target = $region72
        $region71: #{tpu_custom_call.1} parent=11 // pred_region
          %680 = vsyncadd [#allocation21], 0
          %s682 = sshll.u32 %s16, 4
          %s683 = int_to_ptr.hbm [resolvable:$true] %s682
          %s684 = sshll.u32 [#allocation20], 4
          %s685 = int_to_ptr.vmem [resolvable:$true] %s684
          %687 = dma.hbm_to_vmem [thread:$0]  %s683, 16, %s685, [#allocation21]
        $region72: #{tpu_custom_call.1} parent=11 // pred_fallthru
          _
        // Predicated region
        $region73: #{tpu_custom_call.1} parent=11 // pred_check
          %p688 = pneg %p425
        $region74: #{tpu_custom_call.1} parent=11 // pred_check_branch
          %690 = sbr.rel (%p688) target = $region76
        $region75: #{tpu_custom_call.1} parent=11 // pred_region
          _
        $region76: #{tpu_custom_call.1} parent=11 // pred_fallthru
          _
        // Predicated region
        $region77: #{tpu_custom_call.1} parent=11 // pred_check
          %p691 = pneg %p446
        $region78: #{tpu_custom_call.1} parent=11 // pred_check_branch
          %693 = sbr.rel (%p691) target = $region80
        $region79: #{tpu_custom_call.1} parent=11 // pred_region
          _
        $region80: #{tpu_custom_call.1} parent=11 // pred_fallthru
          _
        // Predicated region
        $region81: #{tpu_custom_call.1} parent=11 // pred_check
          %p694 = pneg %p467
        $region82: #{tpu_custom_call.1} parent=11 // pred_check_branch
          %696 = sbr.rel (%p694) target = $region84
        $region83: #{tpu_custom_call.1} parent=11 // pred_region
          %698 = vsyncadd [#allocation21], 0
          %s700 = sshll.u32 %s19, 4
          %s701 = int_to_ptr.hbm [resolvable:$true] %s700
          %s702 = sshll.u32 [#allocation22], 4
          %s703 = int_to_ptr.vmem [resolvable:$true] %s702
          %705 = dma.hbm_to_vmem [thread:$0]  %s701, 16, %s703, [#allocation21]
        $region84: #{tpu_custom_call.1} parent=11 // pred_fallthru
          _
        // Predicated region
        $region85: #{tpu_custom_call.1} parent=11 // pred_check
          %p706 = pneg %p488
        $region86: #{tpu_custom_call.1} parent=11 // pred_check_branch
          %708 = sbr.rel (%p706) target = $region88
        $region87: #{tpu_custom_call.1} parent=11 // pred_region
          _
        $region88: #{tpu_custom_call.1} parent=11 // pred_fallthru
          _
      $region12: #{tpu_custom_call.1} parent=5 // pred_fallthru
        _
      %p709 = scmp.lt.s32.totalorder %s37, 2
      // Predicated region
      $region89: #{tpu_custom_call.1} parent=5 // pred_check
        %p710 = pneg %p709
      $region90: #{tpu_custom_call.1} parent=5 // pred_check_branch
        %712 = sbr.rel (%p710) target = $region92
      $region91: #{tpu_custom_call.1} parent=5 // pred_region
        // Predicated region
        $region93: #{tpu_custom_call.1} parent=91 // pred_check
          %p713 = pneg %p57
        $region94: #{tpu_custom_call.1} parent=91 // pred_check_branch
          %715 = sbr.rel (%p713) target = $region96
        $region95: #{tpu_custom_call.1} parent=91 // pred_region
          %p716 = scmp.lt.s32.totalorder %s37, 1
          %s717 = scalar_select %p716, %s37, 1
          %s718 = smul.addr %s717, 8
          %s719 = scalar_lea.vmem %s0, %s718
        $region96: #{tpu_custom_call.1} parent=91 // pred_fallthru
          _
        // Predicated region
        $region97: #{tpu_custom_call.1} parent=91 // pred_check
          %p720 = pneg %p83
        $region98: #{tpu_custom_call.1} parent=91 // pred_check_branch
          %722 = sbr.rel (%p720) target = $region100
        $region99: #{tpu_custom_call.1} parent=91 // pred_region
          %p723 = scmp.lt.s32.totalorder %s37, 1
          %s724 = scalar_select %p723, %s37, 1
          %s725 = smul.addr %s724, 8
          %s726 = scalar_lea.vmem %s1, %s725
        $region100: #{tpu_custom_call.1} parent=91 // pred_fallthru
          _
      $region92: #{tpu_custom_call.1} parent=5 // pred_fallthru
        _
      %p727 = scmp.le.s32.totalorder 1, %s37
      %p728 = scmp.lt.s32.totalorder %s37, 3
      %p729 = pnand %p727, %p728
      %p730 = pneg %p729
      // Predicated region
      $region101: #{tpu_custom_call.1} parent=5 // pred_check
        _
      $region102: #{tpu_custom_call.1} parent=5 // pred_check_branch
        %732 = sbr.rel (%p729) target = $region104
      $region103: #{tpu_custom_call.1} parent=5 // pred_region
        %s733 = ssub.s32 %s37, 1
        // Predicated region
        $region105: #{tpu_custom_call.1} parent=103 // pred_check
          %p734 = pneg %p131
        $region106: #{tpu_custom_call.1} parent=103 // pred_check_branch
          %736 = sbr.rel (%p734) target = $region108
        $region107: #{tpu_custom_call.1} parent=103 // pred_region
          %738 = dma.done [#allocation3], 16
        $region108: #{tpu_custom_call.1} parent=103 // pred_fallthru
          _
        // Predicated region
        $region109: #{tpu_custom_call.1} parent=103 // pred_check
          %p739 = pneg %p173
        $region110: #{tpu_custom_call.1} parent=103 // pred_check_branch
          %741 = sbr.rel (%p739) target = $region112
        $region111: #{tpu_custom_call.1} parent=103 // pred_region
          %743 = dma.done [#allocation6], 16
        $region112: #{tpu_custom_call.1} parent=103 // pred_fallthru
          _
        // Predicated region
        $region113: #{tpu_custom_call.1} parent=103 // pred_check
          %p744 = pneg %p194
        $region114: #{tpu_custom_call.1} parent=103 // pred_check_branch
          %746 = sbr.rel (%p744) target = $region116
        $region115: #{tpu_custom_call.1} parent=103 // pred_region
          %748 = dma.done [#allocation6], 16
        $region116: #{tpu_custom_call.1} parent=103 // pred_fallthru
          _
        // Predicated region
        $region117: #{tpu_custom_call.1} parent=103 // pred_check
          %p749 = pneg %p215
        $region118: #{tpu_custom_call.1} parent=103 // pred_check_branch
          %751 = sbr.rel (%p749) target = $region120
        $region119: #{tpu_custom_call.1} parent=103 // pred_region
          %753 = dma.done [#allocation9], 16
        $region120: #{tpu_custom_call.1} parent=103 // pred_fallthru
          _
        // Predicated region
        $region121: #{tpu_custom_call.1} parent=103 // pred_check
          %p754 = pneg %p257
        $region122: #{tpu_custom_call.1} parent=103 // pred_check_branch
          %756 = sbr.rel (%p754) target = $region124
        $region123: #{tpu_custom_call.1} parent=103 // pred_region
          %758 = dma.done [#allocation9], 256
        $region124: #{tpu_custom_call.1} parent=103 // pred_fallthru
          _
        // Predicated region
        $region125: #{tpu_custom_call.1} parent=103 // pred_check
          %p759 = pneg %p278
        $region126: #{tpu_custom_call.1} parent=103 // pred_check_branch
          %761 = sbr.rel (%p759) target = $region128
        $region127: #{tpu_custom_call.1} parent=103 // pred_region
          %763 = dma.done [#allocation12], 16
        $region128: #{tpu_custom_call.1} parent=103 // pred_fallthru
          _
        // Predicated region
        $region129: #{tpu_custom_call.1} parent=103 // pred_check
          %p764 = pneg %p299
        $region130: #{tpu_custom_call.1} parent=103 // pred_check_branch
          %766 = sbr.rel (%p764) target = $region132
        $region131: #{tpu_custom_call.1} parent=103 // pred_region
          %768 = dma.done [#allocation12], 256
        $region132: #{tpu_custom_call.1} parent=103 // pred_fallthru
          _
        // Predicated region
        $region133: #{tpu_custom_call.1} parent=103 // pred_check
          %p769 = pneg %p320
        $region134: #{tpu_custom_call.1} parent=103 // pred_check_branch
          %771 = sbr.rel (%p769) target = $region136
        $region135: #{tpu_custom_call.1} parent=103 // pred_region
          %773 = dma.done [#allocation15], 16
        $region136: #{tpu_custom_call.1} parent=103 // pred_fallthru
          _
        // Predicated region
        $region137: #{tpu_custom_call.1} parent=103 // pred_check
          %p774 = pneg %p341
        $region138: #{tpu_custom_call.1} parent=103 // pred_check_branch
          %776 = sbr.rel (%p774) target = $region140
        $region139: #{tpu_custom_call.1} parent=103 // pred_region
          %778 = dma.done [#allocation15], 16
        $region140: #{tpu_custom_call.1} parent=103 // pred_fallthru
          _
        // Predicated region
        $region141: #{tpu_custom_call.1} parent=103 // pred_check
          %p779 = pneg %p362
        $region142: #{tpu_custom_call.1} parent=103 // pred_check_branch
          %781 = sbr.rel (%p779) target = $region144
        $region143: #{tpu_custom_call.1} parent=103 // pred_region
          %783 = dma.done [#allocation18], 16
        $region144: #{tpu_custom_call.1} parent=103 // pred_fallthru
          _
        // Predicated region
        $region145: #{tpu_custom_call.1} parent=103 // pred_check
          %p784 = pneg %p383
        $region146: #{tpu_custom_call.1} parent=103 // pred_check_branch
          %786 = sbr.rel (%p784) target = $region148
        $region147: #{tpu_custom_call.1} parent=103 // pred_region
          %788 = dma.done [#allocation18], 256
        $region148: #{tpu_custom_call.1} parent=103 // pred_fallthru
          _
        // Predicated region
        $region149: #{tpu_custom_call.1} parent=103 // pred_check
          %p789 = pneg %p404
        $region150: #{tpu_custom_call.1} parent=103 // pred_check_branch
          %791 = sbr.rel (%p789) target = $region152
        $region151: #{tpu_custom_call.1} parent=103 // pred_region
          %793 = dma.done [#allocation21], 16
        $region152: #{tpu_custom_call.1} parent=103 // pred_fallthru
          _
        // Predicated region
        $region153: #{tpu_custom_call.1} parent=103 // pred_check
          %p794 = pneg %p467
        $region154: #{tpu_custom_call.1} parent=103 // pred_check_branch
          %796 = sbr.rel (%p794) target = $region156
        $region155: #{tpu_custom_call.1} parent=103 // pred_region
          %798 = dma.done [#allocation21], 16
        $region156: #{tpu_custom_call.1} parent=103 // pred_fallthru
          _
        %p799 = scmp.lt.s32.totalorder %s42, 1
        %s800 = scalar_select %p799, %s42, 1
        %s801 = smul.addr %s800, 8
        %s802 = scalar_lea.vmem %s0, %s801
        %p803 = pneg %p63
        %p804 = pneg %p60
        %p805 = scmp.lt.s32.totalorder %s42, 1
        %s806 = scalar_select %p805, %s42, 1
        %s807 = smul.addr %s806, 8
        %s808 = scalar_lea.vmem %s1, %s807
        %p809 = pneg %p89
        %p810 = pneg %p86
        %p811 = pneg %p110
        %p812 = pneg %p107
        %p813 = pneg %p131
        %p814 = pneg %p128
        %p815 = pneg %p152
        %p816 = pneg %p149
        %p817 = pneg %p173
        %p818 = pneg %p170
        %p819 = pneg %p194
        %p820 = pneg %p191
        %p821 = pneg %p215
        %p822 = pneg %p212
        %p823 = pneg %p236
        %p824 = pneg %p233
        %p825 = pneg %p257
        %p826 = pneg %p254
        %p827 = pneg %p278
        %p828 = pneg %p275
        %p829 = pneg %p299
        %p830 = pneg %p296
        %p831 = pneg %p320
        %p832 = pneg %p317
        %p833 = pneg %p341
        %p834 = pneg %p338
        %p835 = pneg %p362
        %p836 = pneg %p359
        %p837 = pneg %p383
        %p838 = pneg %p380
        %p839 = pneg %p404
        %p840 = pneg %p401
        %p841 = pneg %p425
        %p842 = pneg %p422
        %p843 = pneg %p446
        %p844 = pneg %p443
        %p845 = pneg %p467
        %p846 = pneg %p464
        %p847 = pneg %p488
        %p848 = pneg %p485
        %p849 = pneg %p514
        %p850 = pneg %p511
        %s851 = sand.u32 %s501, 1
        %s852 = scalar_lea.sflag [#allocation4], %s851
        %s853 = sand.u32 %s501, 1
        %s854 = smul.addr %s853, 8
        %s855 = scalar_lea.vmem [#allocation23], %s854
        %p856 = scmp.lt.s32.totalorder %s42, 1
        %s857 = scalar_select %p856, %s42, 1
        %s858 = smul.addr %s857, 8
        %s859 = scalar_lea.vmem %s0, %s858
        %p860 = scmp.lt.s32.totalorder %s42, 1
        %s861 = scalar_select %p860, %s42, 1
        %s862 = smul.addr %s861, 8
        %s863 = scalar_lea.vmem %s1, %s862
        %v865 = vld [vmem:[%s859] sm:$0xff]
        %v866 = vld [vmem:[%s863] sm:$0xff]
        %v867 = vpack.c.bf16 %v865, %v865
        %v868 = vld [vmem:[%s2] sm:$0xf]
        %v869 = vld [vmem:[%s2 + $0x4] sm:$0xf]
        %v870 = vld [vmem:[%s2 + $0x8] sm:$0xf]
        %v871 = vld [vmem:[%s2 + $0xc] sm:$0xf]
        %v872 = vld [vmem:[#allocation2] sm:$0x1]
        %v874 = vperm.slane %v872, 0
        %v880 = vunpack.c.l.b16 %v868
        %v881 = vunpack.c.l.b16 %v869
        %v882 = vunpack.c.l.b16 %v870
        %v883 = vunpack.c.l.b16 %v871
        %v884 = vpack.c.b16 %v881, %v880
        %v885 = vpack.c.b16 %v883, %v882
        %vm888 = vcmask 261120
        %v890 = vsel %vm888, %v867, 0
        %892 = vmatpush.bf16.msra.mxu0 0
        %893 = vmatpush.bf16.msra.mxu0 0
        %894 = vmatpush.bf16.msra.mxu0 0
        %895 = vmatpush.bf16.msra.mxu0 0
        %896 = vmatpush.bf16.msra.mxu0 0
        %897 = vmatpush.bf16.msra.mxu0 0
        %898 = vmatpush.bf16.msra.mxu0 %v885
        %899 = vmatpush.bf16.msra.mxu0 %v884
        %900 = vmatmul.bf16.gmra.mxu0 %v890
        %v901 = vpop.f32.mrf.mxu0
        %v902 = vadd.f32 %v874, %v901
        %v903 = vpop.f32.mrf.mxu0
        %904 = vdwg.mxu0
        %v905 = vmul.f32 %v902, 0.35355338
        %v906 = vpack.c.bf16 %v905, %v905
        %v907 = vpack.c.bf16 %v902, %v902
        %909 = vrot.lane.b32.xlu0 %v907, 96
        %v910 = vpop.permute.xlu0 %909
        %vm911 = vcmask 64512
        %v913 = vsel %vm911, %v906, 0
        %v916 = vsel %vm911, %v910, 0
        %918 = vmatpush.bf16.xpose.msra.mxu0 0
        %919 = vmatpush.bf16.xpose.msra.mxu0 0
        %920 = vmatpush.bf16.xpose.msra.mxu0 0
        %921 = vmatpush.bf16.xpose.msra.mxu0 0
        %922 = vmatpush.bf16.xpose.msra.mxu0 0
        %923 = vmatpush.bf16.xpose.msra.mxu0 0
        %924 = vmatpush.bf16.xpose.msra.mxu0 0
        %925 = vmatpush.bf16.xpose.msra.mxu0 %v916
        %926 = vmatmul.bf16.gmra.mxu0 %v913
        %v927 = vpop.f32.mrf.mxu0
        %v928 = vadd.f32 0.0, %v927
        %v929 = vpop.f32.mrf.mxu0
        %930 = vdwg.mxu0
        %v931 = vsel %vm911, %v928, -inf
        %932 = vmax.xlane.f32.xlu0 %v931
        %v933 = vpop.xlane.xlu0 %932
        %v934 = vsub.f32 %v928, %v933
        %v935 = vmul.f32 %v934, 1.442695
        %v936 = vpow.pop %v935
        %v937 = vsel %vm911, %v936, 0.0
        %938 = vadd.xlane.f32.xlu0 %v937
        %v939 = vpop.xlane.xlu0 %938
        %v940 = vrcp.pop %v939
        %v941 = vmul.f32 %v936, %v940
        %v942 = vpack.c.bf16 %v941, %v941
        %943 = vrot.lane.b32.xlu0 %v907, 64
        %v944 = vpop.permute.xlu0 %943
        %v946 = vsel %vm911, %v942, 0
        %vm948 = vcmask 1043456
        %v950 = vsel %vm948, %v944, 0
        %952 = vmatpush.bf16.msra.mxu0 0
        %953 = vmatpush.bf16.msra.mxu0 0
        %954 = vmatpush.bf16.msra.mxu0 0
        %955 = vmatpush.bf16.msra.mxu0 0
        %956 = vmatpush.bf16.msra.mxu0 0
        %957 = vmatpush.bf16.msra.mxu0 0
        %958 = vmatpush.bf16.msra.mxu0 0
        %959 = vmatpush.bf16.msra.mxu0 %v950
        %960 = vmatmul.bf16.gmra.mxu0 %v946
        %v961 = vpop.f32.mrf.mxu0
        %v962 = vadd.f32 0.0, %v961
        %v963 = vpop.f32.mrf.mxu0
        %964 = vdwg.mxu0
        %966 = vrot.lane.b32.xlu0 %v906, 120
        %v967 = vpop.permute.xlu0 %966
        %968 = vrot.lane.b32.xlu0 %v907, 88
        %v969 = vpop.permute.xlu0 %968
        %v971 = vsel %vm911, %v967, 0
        %v974 = vsel %vm911, %v969, 0
        %976 = vmatpush.bf16.xpose.msra.mxu0 0
        %977 = vmatpush.bf16.xpose.msra.mxu0 0
        %978 = vmatpush.bf16.xpose.msra.mxu0 0
        %979 = vmatpush.bf16.xpose.msra.mxu0 0
        %980 = vmatpush.bf16.xpose.msra.mxu0 0
        %981 = vmatpush.bf16.xpose.msra.mxu0 0
        %982 = vmatpush.bf16.xpose.msra.mxu0 0
        %983 = vmatpush.bf16.xpose.msra.mxu0 %v974
        %984 = vmatmul.bf16.gmra.mxu0 %v971
        %v985 = vpop.f32.mrf.mxu0
        %v986 = vadd.f32 0.0, %v985
        %v987 = vpop.f32.mrf.mxu0
        %988 = vdwg.mxu0
        %v989 = vsel %vm911, %v986, -inf
        %990 = vmax.xlane.f32.xlu0 %v989
        %v991 = vpop.xlane.xlu0 %990
        %v992 = vsub.f32 %v986, %v991
        %v993 = vmul.f32 %v992, 1.442695
        %v994 = vpow.pop %v993
        %v995 = vsel %vm911, %v994, 0.0
        %996 = vadd.xlane.f32.xlu0 %v995
        %v997 = vpop.xlane.xlu0 %996
        %v998 = vrcp.pop %v997
        %v999 = vmul.f32 %v994, %v998
        %v1000 = vpack.c.bf16 %v999, %v999
        %1001 = vrot.lane.b32.xlu0 %v907, 56
        %v1002 = vpop.permute.xlu0 %1001
        %v1004 = vsel %vm911, %v1000, 0
        %v1007 = vsel %vm948, %v1002, 0
        %1009 = vmatpush.bf16.msra.mxu0 0
        %1010 = vmatpush.bf16.msra.mxu0 0
        %1011 = vmatpush.bf16.msra.mxu0 0
        %1012 = vmatpush.bf16.msra.mxu0 0
        %1013 = vmatpush.bf16.msra.mxu0 0
        %1014 = vmatpush.bf16.msra.mxu0 0
        %1015 = vmatpush.bf16.msra.mxu0 0
        %1016 = vmatpush.bf16.msra.mxu0 %v1007
        %1017 = vmatmul.bf16.gmra.mxu0 %v1004
        %v1018 = vpop.f32.mrf.mxu0
        %v1019 = vadd.f32 0.0, %v1018
        %v1020 = vpop.f32.mrf.mxu0
        %1021 = vdwg.mxu0
        %1022 = vrot.lane.b32.xlu0 %v906, 112
        %v1023 = vpop.permute.xlu0 %1022
        %1024 = vrot.lane.b32.xlu0 %v907, 80
        %v1025 = vpop.permute.xlu0 %1024
        %v1027 = vsel %vm911, %v1023, 0
        %v1030 = vsel %vm911, %v1025, 0
        %1032 = vmatpush.bf16.xpose.msra.mxu0 0
        %1033 = vmatpush.bf16.xpose.msra.mxu0 0
        %1034 = vmatpush.bf16.xpose.msra.mxu0 0
        %1035 = vmatpush.bf16.xpose.msra.mxu0 0
        %1036 = vmatpush.bf16.xpose.msra.mxu0 0
        %1037 = vmatpush.bf16.xpose.msra.mxu0 0
        %1038 = vmatpush.bf16.xpose.msra.mxu0 0
        %1039 = vmatpush.bf16.xpose.msra.mxu0 %v1030
        %1040 = vmatmul.bf16.gmra.mxu0 %v1027
        %v1041 = vpop.f32.mrf.mxu0
        %v1042 = vadd.f32 0.0, %v1041
        %v1043 = vpop.f32.mrf.mxu0
        %1044 = vdwg.mxu0
        %v1045 = vsel %vm911, %v1042, -inf
        %1046 = vmax.xlane.f32.xlu0 %v1045
        %v1047 = vpop.xlane.xlu0 %1046
        %v1048 = vsub.f32 %v1042, %v1047
        %v1049 = vmul.f32 %v1048, 1.442695
        %v1050 = vpow.pop %v1049
        %v1051 = vsel %vm911, %v1050, 0.0
        %1052 = vadd.xlane.f32.xlu0 %v1051
        %v1053 = vpop.xlane.xlu0 %1052
        %v1054 = vrcp.pop %v1053
        %v1055 = vmul.f32 %v1050, %v1054
        %v1056 = vpack.c.bf16 %v1055, %v1055
        %1057 = vrot.lane.b32.xlu0 %v907, 48
        %v1058 = vpop.permute.xlu0 %1057
        %v1060 = vsel %vm911, %v1056, 0
        %v1063 = vsel %vm948, %v1058, 0
        %1065 = vmatpush.bf16.msra.mxu0 0
        %1066 = vmatpush.bf16.msra.mxu0 0
        %1067 = vmatpush.bf16.msra.mxu0 0
        %1068 = vmatpush.bf16.msra.mxu0 0
        %1069 = vmatpush.bf16.msra.mxu0 0
        %1070 = vmatpush.bf16.msra.mxu0 0
        %1071 = vmatpush.bf16.msra.mxu0 0
        %1072 = vmatpush.bf16.msra.mxu0 %v1063
        %1073 = vmatmul.bf16.gmra.mxu0 %v1060
        %v1074 = vpop.f32.mrf.mxu0
        %v1075 = vadd.f32 0.0, %v1074
        %v1076 = vpop.f32.mrf.mxu0
        %1077 = vdwg.mxu0
        %1078 = vrot.lane.b32.xlu0 %v906, 104
        %v1079 = vpop.permute.xlu0 %1078
        %1080 = vrot.lane.b32.xlu0 %v907, 72
        %v1081 = vpop.permute.xlu0 %1080
        %v1083 = vsel %vm911, %v1079, 0
        %v1086 = vsel %vm911, %v1081, 0
        %1088 = vmatpush.bf16.xpose.msra.mxu0 0
        %1089 = vmatpush.bf16.xpose.msra.mxu0 0
        %1090 = vmatpush.bf16.xpose.msra.mxu0 0
        %1091 = vmatpush.bf16.xpose.msra.mxu0 0
        %1092 = vmatpush.bf16.xpose.msra.mxu0 0
        %1093 = vmatpush.bf16.xpose.msra.mxu0 0
        %1094 = vmatpush.bf16.xpose.msra.mxu0 0
        %1095 = vmatpush.bf16.xpose.msra.mxu0 %v1086
        %1096 = vmatmul.bf16.gmra.mxu0 %v1083
        %v1097 = vpop.f32.mrf.mxu0
        %v1098 = vadd.f32 0.0, %v1097
        %v1099 = vpop.f32.mrf.mxu0
        %1100 = vdwg.mxu0
        %v1101 = vsel %vm911, %v1098, -inf
        %1102 = vmax.xlane.f32.xlu0 %v1101
        %v1103 = vpop.xlane.xlu0 %1102
        %v1104 = vsub.f32 %v1098, %v1103
        %v1105 = vmul.f32 %v1104, 1.442695
        %v1106 = vpow.pop %v1105
        %v1107 = vsel %vm911, %v1106, 0.0
        %1108 = vadd.xlane.f32.xlu0 %v1107
        %v1109 = vpop.xlane.xlu0 %1108
        %v1110 = vrcp.pop %v1109
        %v1111 = vmul.f32 %v1106, %v1110
        %v1112 = vpack.c.bf16 %v1111, %v1111
        %1113 = vrot.lane.b32.xlu0 %v907, 40
        %v1114 = vpop.permute.xlu0 %1113
        %v1116 = vsel %vm911, %v1112, 0
        %v1119 = vsel %vm948, %v1114, 0
        %1121 = vmatpush.bf16.msra.mxu0 0
        %1122 = vmatpush.bf16.msra.mxu0 0
        %1123 = vmatpush.bf16.msra.mxu0 0
        %1124 = vmatpush.bf16.msra.mxu0 0
        %1125 = vmatpush.bf16.msra.mxu0 0
        %1126 = vmatpush.bf16.msra.mxu0 0
        %1127 = vmatpush.bf16.msra.mxu0 0
        %1128 = vmatpush.bf16.msra.mxu0 %v1119
        %1129 = vmatmul.bf16.gmra.mxu0 %v1116
        %v1130 = vpop.f32.mrf.mxu0
        %v1131 = vadd.f32 0.0, %v1130
        %v1132 = vpop.f32.mrf.mxu0
        %1133 = vdwg.mxu0
        %1135 = vrot.lane.b32.xlu0 %v1019, 8
        %v1136 = vpop.permute.xlu0 %1135
        %1139 = vrot.lane.b32.xlu0 %v1075, 16
        %v1140 = vpop.permute.xlu0 %1139
        %1143 = vrot.lane.b32.xlu0 %v1131, 24
        %v1144 = vpop.permute.xlu0 %1143
        %v1146 = vsel %vm911, %v962, %v1136
        %vm1147 = vcmask 130048
        %v1148 = vsel %vm1147, %v1146, %v1140
        %vm1149 = vcmask 195584
        %v1150 = vsel %vm1149, %v1148, %v1144
        %v1151 = vpack.c.bf16 %v1150, %v1150
        %v1152 = vld [vmem:[%s4] sm:$0xf]
        %v1153 = vld [vmem:[%s4 + $0x4] sm:$0xf]
        %v1154 = vld [vmem:[%s4 + $0x8] sm:$0xf]
        %v1155 = vld [vmem:[%s4 + $0xc] sm:$0xf]
        %v1156 = vld [vmem:[#allocation5] sm:$0x1]
        %v1158 = vperm.slane %v1156, 0
        %v1164 = vunpack.c.l.b16 %v1152
        %v1165 = vunpack.c.l.b16 %v1153
        %v1166 = vunpack.c.l.b16 %v1154
        %v1167 = vunpack.c.l.b16 %v1155
        %v1168 = vpack.c.b16 %v1165, %v1164
        %v1169 = vpack.c.b16 %v1167, %v1166
        %v1173 = vsel %vm888, %v1151, 0
        %1175 = vmatpush.bf16.msra.mxu0 0
        %1176 = vmatpush.bf16.msra.mxu0 0
        %1177 = vmatpush.bf16.msra.mxu0 0
        %1178 = vmatpush.bf16.msra.mxu0 0
        %1179 = vmatpush.bf16.msra.mxu0 0
        %1180 = vmatpush.bf16.msra.mxu0 0
        %1181 = vmatpush.bf16.msra.mxu0 %v1169
        %1182 = vmatpush.bf16.msra.mxu0 %v1168
        %1183 = vmatmul.bf16.gmra.mxu0 %v1173
        %v1184 = vpop.f32.mrf.mxu0
        %v1185 = vadd.f32 %v1158, %v1184
        %v1186 = vpop.f32.mrf.mxu0
        %1187 = vdwg.mxu0
        %v1188 = vadd.f32 %v865, %v1185
        %v1189 = vld [vmem:[#allocation7] sm:$0x1]
        %v1190 = vld [vmem:[#allocation8] sm:$0x1]
        %v1191 = vsel %vm888, %v1188, 0.0
        %1192 = vadd.xlane.f32.xlu0 %v1191
        %v1193 = vpop.xlane.xlu0 %1192
        %v1194 = vrcp.pop 32.0
        %v1195 = vmul.f32 32.0, %v1194
        %v1196 = vsub.f32 1.0, %v1195
        %v1197 = vmul.f32 %v1194, %v1196
        %v1198 = vadd.f32 %v1194, %v1197
        %vm1199 = vweird.f32 %v1194
        %v1200 = vsel %vm1199, %v1194, %v1198
        %v1201 = vmul.f32 %v1193, %v1200
        %v1202 = vsub.f32 %v1188, %v1201
        %v1203 = vmul.f32 %v1202, %v1202
        %v1204 = vsel %vm888, %v1203, 0.0
        %1205 = vadd.xlane.f32.xlu0 %v1204
        %v1206 = vpop.xlane.xlu0 %1205
        %v1207 = vmul.f32 %v1206, %v1200
        %v1208 = vadd.f32 %v1207, 1e-05
        %v1209 = vrsqrt.pop %v1208
        %v1210 = vmul.f32 %v1209, %v1208
        %v1211 = vmul.f32 %v1210, %v1209
        %v1212 = vmul.f32 0.5, %v1211
        %v1213 = vsub.f32 1.5, %v1212
        %v1214 = vmul.f32 %v1209, %v1213
        %vm1215 = vweird.f32 %v1208
        %vm1216 = vweird.f32 %v1209
        %vm1217 = vmor %vm1215, %vm1216
        %v1218 = vsel %vm1217, %v1209, %v1214
        %v1219 = vmul.f32 %v1202, %v1218
        %v1221 = vperm.slane %v1189, 0
        %v1223 = vmul.f32 %v1219, %v1221
        %v1225 = vperm.slane %v1190, 0
        %v1227 = vadd.f32 %v1223, %v1225
        %v1228 = vld [vmem:[#allocation11] sm:$0x1]
        %v1229 = vpack.c.bf16 %v1227, %v1227
        %v1230 = vld [vmem:[%s8] sm:$0xf]
        %v1231 = vld [vmem:[%s8 + $0x4] sm:$0xf]
        %v1232 = vld [vmem:[%s8 + $0x8] sm:$0xf]
        %v1233 = vld [vmem:[%s8 + $0xc] sm:$0xf]
        %v1235 = vperm.slane %v1228, 0
        %v1241 = vunpack.c.l.b16 %v1230
        %v1242 = vunpack.c.l.b16 %v1231
        %v1243 = vunpack.c.l.b16 %v1232
        %v1244 = vunpack.c.l.b16 %v1233
        %v1245 = vpack.c.b16 %v1242, %v1241
        %v1246 = vpack.c.b16 %v1244, %v1243
        %v1250 = vsel %vm888, %v1229, 0
        %1252 = vmatpush.bf16.msra.mxu0 0
        %1253 = vmatpush.bf16.msra.mxu0 0
        %1254 = vmatpush.bf16.msra.mxu0 0
        %1255 = vmatpush.bf16.msra.mxu0 0
        %1256 = vmatpush.bf16.msra.mxu0 0
        %1257 = vmatpush.bf16.msra.mxu0 0
        %1258 = vmatpush.bf16.msra.mxu0 %v1246
        %1259 = vmatpush.bf16.msra.mxu0 %v1245
        %1260 = vmatmul.bf16.gmra.mxu0 %v1250
        %v1261 = vpop.f32.mrf.mxu0
        %v1262 = vadd.f32 %v1235, %v1261
        %v1263 = vpop.f32.mrf.mxu0
        %1264 = vdwg.mxu0
        %v1265 = vpack.c.bf16 %v866, %v866
        %v1266 = vld [vmem:[#allocation10] sm:$0xf]
        %v1267 = vld [vmem:[#allocation10 + $0x4] sm:$0xf]
        %v1268 = vld [vmem:[#allocation10 + $0x8] sm:$0xf]
        %v1269 = vld [vmem:[#allocation10 + $0xc] sm:$0xf]
        %v1274 = vunpack.c.l.b16 %v1266
        %v1275 = vunpack.c.l.b16 %v1267
        %v1276 = vunpack.c.l.b16 %v1268
        %v1277 = vunpack.c.l.b16 %v1269
        %v1278 = vpack.c.b16 %v1275, %v1274
        %v1279 = vpack.c.b16 %v1277, %v1276
        %1282 = vrot.lane.b32.xlu0 %v1235, 96
        %v1283 = vpop.permute.xlu0 %1282
        %v1286 = vsel %vm888, %v1265, 0
        %1288 = vmatpush.bf16.msra.mxu0 0
        %1289 = vmatpush.bf16.msra.mxu0 0
        %1290 = vmatpush.bf16.msra.mxu0 0
        %1291 = vmatpush.bf16.msra.mxu0 0
        %1292 = vmatpush.bf16.msra.mxu0 0
        %1293 = vmatpush.bf16.msra.mxu0 0
        %1294 = vmatpush.bf16.msra.mxu0 %v1279
        %1295 = vmatpush.bf16.msra.mxu0 %v1278
        %1296 = vmatmul.bf16.gmra.mxu0 %v1286
        %v1297 = vpop.f32.mrf.mxu0
        %v1298 = vadd.f32 %v1283, %v1297
        %v1299 = vpop.f32.mrf.mxu0
        %1300 = vdwg.mxu0
        %v1301 = vmul.f32 %v1262, 0.35355338
        %v1302 = vpack.c.bf16 %v1301, %v1301
        %v1303 = vpack.c.bf16 %v1298, %v1298
        %v1305 = vsel %vm911, %v1302, 0
        %v1308 = vsel %vm911, %v1303, 0
        %1310 = vmatpush.bf16.xpose.msra.mxu0 0
        %1311 = vmatpush.bf16.xpose.msra.mxu0 0
        %1312 = vmatpush.bf16.xpose.msra.mxu0 0
        %1313 = vmatpush.bf16.xpose.msra.mxu0 0
        %1314 = vmatpush.bf16.xpose.msra.mxu0 0
        %1315 = vmatpush.bf16.xpose.msra.mxu0 0
        %1316 = vmatpush.bf16.xpose.msra.mxu0 0
        %1317 = vmatpush.bf16.xpose.msra.mxu0 %v1308
        %1318 = vmatmul.bf16.gmra.mxu0 %v1305
        %v1319 = vpop.f32.mrf.mxu0
        %v1320 = vadd.f32 0.0, %v1319
        %v1321 = vpop.f32.mrf.mxu0
        %1322 = vdwg.mxu0
        %v1323 = vsel %vm911, %v1320, -inf
        %1324 = vmax.xlane.f32.xlu0 %v1323
        %v1325 = vpop.xlane.xlu0 %1324
        %v1326 = vsub.f32 %v1320, %v1325
        %v1327 = vmul.f32 %v1326, 1.442695
        %v1328 = vpow.pop %v1327
        %v1329 = vsel %vm911, %v1328, 0.0
        %1330 = vadd.xlane.f32.xlu0 %v1329
        %v1331 = vpop.xlane.xlu0 %1330
        %v1332 = vrcp.pop %v1331
        %v1333 = vmul.f32 %v1328, %v1332
        %v1334 = vpack.c.bf16 %v1333, %v1333
        %1336 = vrot.lane.b32.xlu0 %v1303, 96
        %v1337 = vpop.permute.xlu0 %1336
        %v1339 = vsel %vm911, %v1334, 0
        %v1342 = vsel %vm948, %v1337, 0
        %1344 = vmatpush.bf16.msra.mxu0 0
        %1345 = vmatpush.bf16.msra.mxu0 0
        %1346 = vmatpush.bf16.msra.mxu0 0
        %1347 = vmatpush.bf16.msra.mxu0 0
        %1348 = vmatpush.bf16.msra.mxu0 0
        %1349 = vmatpush.bf16.msra.mxu0 0
        %1350 = vmatpush.bf16.msra.mxu0 0
        %1351 = vmatpush.bf16.msra.mxu0 %v1342
        %1352 = vmatmul.bf16.gmra.mxu0 %v1339
        %v1353 = vpop.f32.mrf.mxu0
        %v1354 = vadd.f32 0.0, %v1353
        %v1355 = vpop.f32.mrf.mxu0
        %1356 = vdwg.mxu0
        %1358 = vrot.lane.b32.xlu0 %v1302, 120
        %v1359 = vpop.permute.xlu0 %1358
        %1360 = vrot.lane.b32.xlu0 %v1303, 120
        %v1361 = vpop.permute.xlu0 %1360
        %v1363 = vsel %vm911, %v1359, 0
        %v1366 = vsel %vm911, %v1361, 0
        %1368 = vmatpush.bf16.xpose.msra.mxu0 0
        %1369 = vmatpush.bf16.xpose.msra.mxu0 0
        %1370 = vmatpush.bf16.xpose.msra.mxu0 0
        %1371 = vmatpush.bf16.xpose.msra.mxu0 0
        %1372 = vmatpush.bf16.xpose.msra.mxu0 0
        %1373 = vmatpush.bf16.xpose.msra.mxu0 0
        %1374 = vmatpush.bf16.xpose.msra.mxu0 0
        %1375 = vmatpush.bf16.xpose.msra.mxu0 %v1366
        %1376 = vmatmul.bf16.gmra.mxu0 %v1363
        %v1377 = vpop.f32.mrf.mxu0
        %v1378 = vadd.f32 0.0, %v1377
        %v1379 = vpop.f32.mrf.mxu0
        %1380 = vdwg.mxu0
        %v1381 = vsel %vm911, %v1378, -inf
        %1382 = vmax.xlane.f32.xlu0 %v1381
        %v1383 = vpop.xlane.xlu0 %1382
        %v1384 = vsub.f32 %v1378, %v1383
        %v1385 = vmul.f32 %v1384, 1.442695
        %v1386 = vpow.pop %v1385
        %v1387 = vsel %vm911, %v1386, 0.0
        %1388 = vadd.xlane.f32.xlu0 %v1387
        %v1389 = vpop.xlane.xlu0 %1388
        %v1390 = vrcp.pop %v1389
        %v1391 = vmul.f32 %v1386, %v1390
        %v1392 = vpack.c.bf16 %v1391, %v1391
        %1393 = vrot.lane.b32.xlu0 %v1303, 88
        %v1394 = vpop.permute.xlu0 %1393
        %v1396 = vsel %vm911, %v1392, 0
        %v1399 = vsel %vm948, %v1394, 0
        %1401 = vmatpush.bf16.msra.mxu0 0
        %1402 = vmatpush.bf16.msra.mxu0 0
        %1403 = vmatpush.bf16.msra.mxu0 0
        %1404 = vmatpush.bf16.msra.mxu0 0
        %1405 = vmatpush.bf16.msra.mxu0 0
        %1406 = vmatpush.bf16.msra.mxu0 0
        %1407 = vmatpush.bf16.msra.mxu0 0
        %1408 = vmatpush.bf16.msra.mxu0 %v1399
        %1409 = vmatmul.bf16.gmra.mxu0 %v1396
        %v1410 = vpop.f32.mrf.mxu0
        %v1411 = vadd.f32 0.0, %v1410
        %v1412 = vpop.f32.mrf.mxu0
        %1413 = vdwg.mxu0
        %1414 = vrot.lane.b32.xlu0 %v1302, 112
        %v1415 = vpop.permute.xlu0 %1414
        %1416 = vrot.lane.b32.xlu0 %v1303, 112
        %v1417 = vpop.permute.xlu0 %1416
        %v1419 = vsel %vm911, %v1415, 0
        %v1422 = vsel %vm911, %v1417, 0
        %1424 = vmatpush.bf16.xpose.msra.mxu0 0
        %1425 = vmatpush.bf16.xpose.msra.mxu0 0
        %1426 = vmatpush.bf16.xpose.msra.mxu0 0
        %1427 = vmatpush.bf16.xpose.msra.mxu0 0
        %1428 = vmatpush.bf16.xpose.msra.mxu0 0
        %1429 = vmatpush.bf16.xpose.msra.mxu0 0
        %1430 = vmatpush.bf16.xpose.msra.mxu0 0
        %1431 = vmatpush.bf16.xpose.msra.mxu0 %v1422
        %1432 = vmatmul.bf16.gmra.mxu0 %v1419
        %v1433 = vpop.f32.mrf.mxu0
        %v1434 = vadd.f32 0.0, %v1433
        %v1435 = vpop.f32.mrf.mxu0
        %1436 = vdwg.mxu0
        %v1437 = vsel %vm911, %v1434, -inf
        %1438 = vmax.xlane.f32.xlu0 %v1437
        %v1439 = vpop.xlane.xlu0 %1438
        %v1440 = vsub.f32 %v1434, %v1439
        %v1441 = vmul.f32 %v1440, 1.442695
        %v1442 = vpow.pop %v1441
        %v1443 = vsel %vm911, %v1442, 0.0
        %1444 = vadd.xlane.f32.xlu0 %v1443
        %v1445 = vpop.xlane.xlu0 %1444
        %v1446 = vrcp.pop %v1445
        %v1447 = vmul.f32 %v1442, %v1446
        %v1448 = vpack.c.bf16 %v1447, %v1447
        %1449 = vrot.lane.b32.xlu0 %v1303, 80
        %v1450 = vpop.permute.xlu0 %1449
        %v1452 = vsel %vm911, %v1448, 0
        %v1455 = vsel %vm948, %v1450, 0
        %1457 = vmatpush.bf16.msra.mxu0 0
        %1458 = vmatpush.bf16.msra.mxu0 0
        %1459 = vmatpush.bf16.msra.mxu0 0
        %1460 = vmatpush.bf16.msra.mxu0 0
        %1461 = vmatpush.bf16.msra.mxu0 0
        %1462 = vmatpush.bf16.msra.mxu0 0
        %1463 = vmatpush.bf16.msra.mxu0 0
        %1464 = vmatpush.bf16.msra.mxu0 %v1455
        %1465 = vmatmul.bf16.gmra.mxu0 %v1452
        %v1466 = vpop.f32.mrf.mxu0
        %v1467 = vadd.f32 0.0, %v1466
        %v1468 = vpop.f32.mrf.mxu0
        %1469 = vdwg.mxu0
        %1470 = vrot.lane.b32.xlu0 %v1302, 104
        %v1471 = vpop.permute.xlu0 %1470
        %1472 = vrot.lane.b32.xlu0 %v1303, 104
        %v1473 = vpop.permute.xlu0 %1472
        %v1475 = vsel %vm911, %v1471, 0
        %v1478 = vsel %vm911, %v1473, 0
        %1480 = vmatpush.bf16.xpose.msra.mxu0 0
        %1481 = vmatpush.bf16.xpose.msra.mxu0 0
        %1482 = vmatpush.bf16.xpose.msra.mxu0 0
        %1483 = vmatpush.bf16.xpose.msra.mxu0 0
        %1484 = vmatpush.bf16.xpose.msra.mxu0 0
        %1485 = vmatpush.bf16.xpose.msra.mxu0 0
        %1486 = vmatpush.bf16.xpose.msra.mxu0 0
        %1487 = vmatpush.bf16.xpose.msra.mxu0 %v1478
        %1488 = vmatmul.bf16.gmra.mxu0 %v1475
        %v1489 = vpop.f32.mrf.mxu0
        %v1490 = vadd.f32 0.0, %v1489
        %v1491 = vpop.f32.mrf.mxu0
        %1492 = vdwg.mxu0
        %v1493 = vsel %vm911, %v1490, -inf
        %1494 = vmax.xlane.f32.xlu0 %v1493
        %v1495 = vpop.xlane.xlu0 %1494
        %v1496 = vsub.f32 %v1490, %v1495
        %v1497 = vmul.f32 %v1496, 1.442695
        %v1498 = vpow.pop %v1497
        %v1499 = vsel %vm911, %v1498, 0.0
        %1500 = vadd.xlane.f32.xlu0 %v1499
        %v1501 = vpop.xlane.xlu0 %1500
        %v1502 = vrcp.pop %v1501
        %v1503 = vmul.f32 %v1498, %v1502
        %v1504 = vpack.c.bf16 %v1503, %v1503
        %1505 = vrot.lane.b32.xlu0 %v1303, 72
        %v1506 = vpop.permute.xlu0 %1505
        %v1508 = vsel %vm911, %v1504, 0
        %v1511 = vsel %vm948, %v1506, 0
        %1513 = vmatpush.bf16.msra.mxu0 0
        %1514 = vmatpush.bf16.msra.mxu0 0
        %1515 = vmatpush.bf16.msra.mxu0 0
        %1516 = vmatpush.bf16.msra.mxu0 0
        %1517 = vmatpush.bf16.msra.mxu0 0
        %1518 = vmatpush.bf16.msra.mxu0 0
        %1519 = vmatpush.bf16.msra.mxu0 0
        %1520 = vmatpush.bf16.msra.mxu0 %v1511
        %1521 = vmatmul.bf16.gmra.mxu0 %v1508
        %v1522 = vpop.f32.mrf.mxu0
        %v1523 = vadd.f32 0.0, %v1522
        %v1524 = vpop.f32.mrf.mxu0
        %1525 = vdwg.mxu0
        %1527 = vrot.lane.b32.xlu0 %v1411, 8
        %v1528 = vpop.permute.xlu0 %1527
        %1531 = vrot.lane.b32.xlu0 %v1467, 16
        %v1532 = vpop.permute.xlu0 %1531
        %1535 = vrot.lane.b32.xlu0 %v1523, 24
        %v1536 = vpop.permute.xlu0 %1535
        %v1538 = vsel %vm911, %v1354, %v1528
        %v1539 = vsel %vm1147, %v1538, %v1532
        %v1540 = vsel %vm1149, %v1539, %v1536
        %v1541 = vpack.c.bf16 %v1540, %v1540
        %v1542 = vld [vmem:[#allocation13] sm:$0xf]
        %v1543 = vld [vmem:[#allocation13 + $0x4] sm:$0xf]
        %v1544 = vld [vmem:[#allocation13 + $0x8] sm:$0xf]
        %v1545 = vld [vmem:[#allocation13 + $0xc] sm:$0xf]
        %v1546 = vld [vmem:[#allocation14] sm:$0x1]
        %v1548 = vperm.slane %v1546, 0
        %v1554 = vunpack.c.l.b16 %v1542
        %v1555 = vunpack.c.l.b16 %v1543
        %v1556 = vunpack.c.l.b16 %v1544
        %v1557 = vunpack.c.l.b16 %v1545
        %v1558 = vpack.c.b16 %v1555, %v1554
        %v1559 = vpack.c.b16 %v1557, %v1556
        %v1563 = vsel %vm888, %v1541, 0
        %1565 = vmatpush.bf16.msra.mxu0 0
        %1566 = vmatpush.bf16.msra.mxu0 0
        %1567 = vmatpush.bf16.msra.mxu0 0
        %1568 = vmatpush.bf16.msra.mxu0 0
        %1569 = vmatpush.bf16.msra.mxu0 0
        %1570 = vmatpush.bf16.msra.mxu0 0
        %1571 = vmatpush.bf16.msra.mxu0 %v1559
        %1572 = vmatpush.bf16.msra.mxu0 %v1558
        %1573 = vmatmul.bf16.gmra.mxu0 %v1563
        %v1574 = vpop.f32.mrf.mxu0
        %v1575 = vadd.f32 %v1548, %v1574
        %v1576 = vpop.f32.mrf.mxu0
        %1577 = vdwg.mxu0
        %v1578 = vadd.f32 %v1227, %v1575
        %v1579 = vld [vmem:[#allocation16] sm:$0x1]
        %v1580 = vld [vmem:[#allocation17] sm:$0x1]
        %v1581 = vsel %vm888, %v1578, 0.0
        %1582 = vadd.xlane.f32.xlu0 %v1581
        %v1583 = vpop.xlane.xlu0 %1582
        %v1584 = vmul.f32 %v1583, %v1200
        %v1585 = vsub.f32 %v1578, %v1584
        %v1586 = vmul.f32 %v1585, %v1585
        %v1587 = vsel %vm888, %v1586, 0.0
        %1588 = vadd.xlane.f32.xlu0 %v1587
        %v1589 = vpop.xlane.xlu0 %1588
        %v1590 = vmul.f32 %v1589, %v1200
        %v1591 = vadd.f32 %v1590, 1e-05
        %v1592 = vrsqrt.pop %v1591
        %v1593 = vmul.f32 %v1592, %v1591
        %v1594 = vmul.f32 %v1593, %v1592
        %v1595 = vmul.f32 0.5, %v1594
        %v1596 = vsub.f32 1.5, %v1595
        %v1597 = vmul.f32 %v1592, %v1596
        %vm1598 = vweird.f32 %v1591
        %vm1599 = vweird.f32 %v1592
        %vm1600 = vmor %vm1598, %vm1599
        %v1601 = vsel %vm1600, %v1592, %v1597
        %v1602 = vmul.f32 %v1585, %v1601
        %v1604 = vperm.slane %v1579, 0
        %v1606 = vmul.f32 %v1602, %v1604
        %v1608 = vperm.slane %v1580, 0
        %v1610 = vadd.f32 %v1606, %v1608
        %v1611 = vpack.c.bf16 %v1610, %v1610
        %v1612 = vld [vmem:[#allocation19] sm:$0xf]
        %v1613 = vld [vmem:[#allocation19 + $0x4] sm:$0xf]
        %v1614 = vld [vmem:[#allocation19 + $0x8] sm:$0xf]
        %v1615 = vld [vmem:[#allocation19 + $0xc] sm:$0xf]
        %v1616 = vld [vmem:[#allocation20] sm:$0x1]
        %v1618 = vperm.slane %v1616, 0
        %v1624 = vunpack.c.l.b16 %v1612
        %v1625 = vunpack.c.l.b16 %v1613
        %v1626 = vunpack.c.l.b16 %v1614
        %v1627 = vunpack.c.l.b16 %v1615
        %v1628 = vpack.c.b16 %v1625, %v1624
        %v1629 = vpack.c.b16 %v1627, %v1626
        %v1633 = vsel %vm888, %v1611, 0
        %1635 = vmatpush.bf16.msra.mxu0 0
        %1636 = vmatpush.bf16.msra.mxu0 0
        %1637 = vmatpush.bf16.msra.mxu0 0
        %1638 = vmatpush.bf16.msra.mxu0 0
        %1639 = vmatpush.bf16.msra.mxu0 0
        %1640 = vmatpush.bf16.msra.mxu0 0
        %1641 = vmatpush.bf16.msra.mxu0 %v1629
        %1642 = vmatpush.bf16.msra.mxu0 %v1628
        %1643 = vmatmul.bf16.gmra.mxu0 %v1633
        %v1644 = vpop.f32.mrf.mxu0
        %v1645 = vadd.f32 %v1618, %v1644
        %v1646 = vpop.f32.mrf.mxu0
        %1647 = vdwg.mxu0
        %v1648 = vmax.f32 %v1645, 0.0
        %v1649 = vpack.c.bf16 %v1648, %v1648
        %v1650 = vld [vmem:[%s17] sm:$0xf]
        %v1651 = vld [vmem:[%s17 + $0x4] sm:$0xf]
        %v1652 = vld [vmem:[%s17 + $0x8] sm:$0xf]
        %v1653 = vld [vmem:[%s17 + $0xc] sm:$0xf]
        %v1654 = vld [vmem:[%s17 + $0x10] sm:$0xf]
        %v1655 = vld [vmem:[%s17 + $0x14] sm:$0xf]
        %v1656 = vld [vmem:[%s17 + $0x18] sm:$0xf]
        %v1657 = vld [vmem:[%s17 + $0x1c] sm:$0xf]
        %v1658 = vld [vmem:[%s17 + $0x20] sm:$0xf]
        %v1659 = vld [vmem:[%s17 + $0x24] sm:$0xf]
        %v1660 = vld [vmem:[%s17 + $0x28] sm:$0xf]
        %v1661 = vld [vmem:[%s17 + $0x2c] sm:$0xf]
        %v1662 = vld [vmem:[%s17 + $0x30] sm:$0xf]
        %v1663 = vld [vmem:[%s17 + $0x34] sm:$0xf]
        %v1664 = vld [vmem:[%s17 + $0x38] sm:$0xf]
        %v1665 = vld [vmem:[%s17 + $0x3c] sm:$0xf]
        %v1666 = vld [vmem:[%s18] sm:$0x1]
        %v1668 = vperm.slane %v1666, 0
        %v1686 = vunpack.c.l.b16 %v1650
        %v1687 = vunpack.c.l.b16 %v1651
        %v1688 = vunpack.c.l.b16 %v1652
        %v1689 = vunpack.c.l.b16 %v1653
        %v1690 = vunpack.c.l.b16 %v1654
        %v1691 = vunpack.c.l.b16 %v1655
        %v1692 = vunpack.c.l.b16 %v1656
        %v1693 = vunpack.c.l.b16 %v1657
        %v1694 = vunpack.c.l.b16 %v1658
        %v1695 = vunpack.c.l.b16 %v1659
        %v1696 = vunpack.c.l.b16 %v1660
        %v1697 = vunpack.c.l.b16 %v1661
        %v1698 = vunpack.c.l.b16 %v1662
        %v1699 = vunpack.c.l.b16 %v1663
        %v1700 = vunpack.c.l.b16 %v1664
        %v1701 = vunpack.c.l.b16 %v1665
        %v1702 = vpack.c.b16 %v1687, %v1686
        %v1703 = vpack.c.b16 %v1689, %v1688
        %v1704 = vpack.c.b16 %v1691, %v1690
        %v1705 = vpack.c.b16 %v1693, %v1692
        %v1706 = vpack.c.b16 %v1695, %v1694
        %v1707 = vpack.c.b16 %v1697, %v1696
        %v1708 = vpack.c.b16 %v1699, %v1698
        %v1709 = vpack.c.b16 %v1701, %v1700
        %1718 = vmatpush.bf16.msra.mxu0 %v1709
        %1719 = vmatpush.bf16.msra.mxu0 %v1708
        %1720 = vmatpush.bf16.msra.mxu0 %v1707
        %1721 = vmatpush.bf16.msra.mxu0 %v1706
        %1722 = vmatpush.bf16.msra.mxu0 %v1705
        %1723 = vmatpush.bf16.msra.mxu0 %v1704
        %1724 = vmatpush.bf16.msra.mxu0 %v1703
        %1725 = vmatpush.bf16.msra.mxu0 %v1702
        %1726 = vmatmul.bf16.gmra.mxu0 %v1649
        %v1727 = vpop.f32.mrf.mxu0
        %v1728 = vadd.f32 %v1668, %v1727
        %v1729 = vpop.f32.mrf.mxu0
        %1730 = vdwg.mxu0
        %v1731 = vadd.f32 %v1610, %v1728
        %v1732 = vld [vmem:[#allocation22] sm:$0x1]
        %v1733 = vld [vmem:[%s20] sm:$0x1]
        %v1734 = vsel %vm888, %v1731, 0.0
        %1735 = vadd.xlane.f32.xlu0 %v1734
        %v1736 = vpop.xlane.xlu0 %1735
        %v1737 = vmul.f32 %v1736, %v1200
        %v1738 = vsub.f32 %v1731, %v1737
        %v1739 = vmul.f32 %v1738, %v1738
        %v1740 = vsel %vm888, %v1739, 0.0
        %1741 = vadd.xlane.f32.xlu0 %v1740
        %v1742 = vpop.xlane.xlu0 %1741
        %v1743 = vmul.f32 %v1742, %v1200
        %v1744 = vadd.f32 %v1743, 1e-05
        %v1745 = vrsqrt.pop %v1744
        %v1746 = vmul.f32 %v1745, %v1744
        %v1747 = vmul.f32 %v1746, %v1745
        %v1748 = vmul.f32 0.5, %v1747
        %v1749 = vsub.f32 1.5, %v1748
        %v1750 = vmul.f32 %v1745, %v1749
        %vm1751 = vweird.f32 %v1744
        %vm1752 = vweird.f32 %v1745
        %vm1753 = vmor %vm1751, %vm1752
        %v1754 = vsel %vm1753, %v1745, %v1750
        %v1755 = vmul.f32 %v1738, %v1754
        %v1757 = vperm.slane %v1732, 0
        %v1759 = vmul.f32 %v1755, %v1757
        %v1761 = vperm.slane %v1733, 0
        %v1763 = vadd.f32 %v1759, %v1761
        %1764 = vst.msk [vmem:[%s855] sm:$0xff] %vm888, %v1763
        %s1765 = sand.u32 %s501, 1
        %s1766 = scalar_lea.sflag [#allocation4], %s1765
        %s1767 = sand.u32 %s501, 1
        %s1768 = smul.addr %s1767, 8
        %s1769 = scalar_lea.vmem [#allocation23], %s1768
        // Predicated region
        $region157: #{tpu_custom_call.1} parent=103 // pred_check
          %p1770 = pneg %p511
        $region158: #{tpu_custom_call.1} parent=103 // pred_check_branch
          %1772 = sbr.rel (%p1770) target = $region160
        $region159: #{tpu_custom_call.1} parent=103 // pred_region
          %1774 = vsyncadd %s1766, 0
          %s1775 = smul.addr %s42, 8
          %s1776 = scalar_lea.hbm %s21, %s1775
          %s1778 = sshll.u32 %s1769, 4
          %s1779 = int_to_ptr.vmem [resolvable:$true] %s1778
          %s1780 = sshll.u32 %s1776, 4
          %s1781 = int_to_ptr.hbm [resolvable:$true] %s1780
          %1783 = dma.vmem_to_hbm [thread:$0]  %s1779, 128, %s1781, %s1766
        $region160: #{tpu_custom_call.1} parent=103 // pred_fallthru
          _
      $region104: #{tpu_custom_call.1} parent=5 // pred_fallthru
        _
      %p1784 = scmp.le.s32.totalorder 2, %s37
      // Predicated region
      $region161: #{tpu_custom_call.1} parent=5 // pred_check
        %p1785 = pneg %p1784
      $region162: #{tpu_custom_call.1} parent=5 // pred_check_branch
        %1787 = sbr.rel (%p1785) target = $region164
      $region163: #{tpu_custom_call.1} parent=5 // pred_region
        %s1788 = ssub.s32 %s37, 2
        // Predicated region
        $region165: #{tpu_custom_call.1} parent=163 // pred_check
          %p1789 = pneg %p517
        $region166: #{tpu_custom_call.1} parent=163 // pred_check_branch
          %1791 = sbr.rel (%p1789) target = $region168
        $region167: #{tpu_custom_call.1} parent=163 // pred_region
          %s1792 = sand.u32 %s502, 1
          %s1793 = scalar_lea.sflag [#allocation4], %s1792
          %s1794 = sand.u32 %s502, 1
          %s1795 = smul.addr %s1794, 8
          %s1796 = scalar_lea.vmem [#allocation23], %s1795
          %1798 = dma.done %s1793, 128
        $region168: #{tpu_custom_call.1} parent=163 // pred_fallthru
          _
      $region164: #{tpu_custom_call.1} parent=5 // pred_fallthru
        _
    $region6: #{tpu_custom_call.1} parent=1 // loop_footer
      %s41 = sadd.s32 1, %s37
    $region7: #{tpu_custom_call.1} parent=1 // loop_footer_branch
      %36 = sbr.rel target = $region3
    $region8: #{tpu_custom_call.1} parent=1 // loop_exit
      _
    %1799 = vsyncpa [#allocation3], 1
    %s1800 = scalar_lea.sflag [#allocation3], 1
    %1801 = vsyncpa %s1800, 1
    %1802 = vsyncpa [#allocation6], 1
    %1803 = vsyncpa [#allocation9], 1
    %1804 = vsyncpa [#allocation12], 1
    %1805 = vsyncpa [#allocation15], 1
    %1806 = vsyncpa [#allocation18], 1
    %1807 = vsyncpa [#allocation21], 1
    %1808 = vsyncpa [#allocation4], 1
    %s1809 = scalar_lea.sflag [#allocation4], 1
    %1810 = vsyncpa %s1809, 1

</llo_original>
